<compile_context>
chip_gen: v5e
topology: v5e:2x2
jax: 0.10.0
libtpu: 0.0.40
codegen_flags: <defaults>
</compile_context>

<pallas_src>
import math
import functools

import jax
import jax.numpy as jnp
from jax.experimental import pallas as pl
from jax.experimental.pallas import tpu as pltpu

# --- model hyperparameters (small, consistent with the module) ---
NTOKEN = 32
NINP = 32      # E (d_model)
NHEAD = 2
NHID = 64      # H (dim_feedforward)
NLAYERS = 2
SEQ = 8        # S
BATCH = 2      # B
LN_EPS = 1e-5
T_PAD = 128    # lane-padded decoder / output width


# ----------------------- fused Pallas kernel -----------------------

def _fused_forward_kernel(tok_ref, pe_ref, mask_ref, emb_ref, w_ref, b_ref,
                          decw_ref, decb_ref, o_ref,
                          *, nlayers, nhead, batch, seq, nhid):
    BS = batch * seq
    ntoken, E = emb_ref.shape
    dh = E // nhead
    bf16 = jnp.bfloat16

    # --- embedding gather as a one-hot MXU matmul (sqrt(E) folded into the table) ---
    tok = tok_ref[...]                                              # (BS, 1) int32
    vocab_iota = jax.lax.broadcasted_iota(jnp.int32, (BS, ntoken), 1)
    onehot = (vocab_iota == tok).astype(bf16)                       # (BS, ntoken)
    x = jnp.dot(onehot, emb_ref[...],
                preferred_element_type=jnp.float32) + pe_ref[...]   # (BS, E) f32

    # precomputed block-diagonal (head, batch) + causal additive mask, (H*BS, H*BS)
    mask = mask_ref[...]

    def layer_norm(y, w, b):
        mu = jnp.mean(y, axis=-1, keepdims=True)
        var = jnp.mean((y - mu) ** 2, axis=-1, keepdims=True)
        return (y - mu) * jax.lax.rsqrt(var + LN_EPS) * w + b

    for l in range(nlayers):
        w_l = w_ref[l]                                   # (3E + nhid, 128) bf16 slab
        b_l = b_ref[l]                                   # (8, 128) f32 slab
        wqkv = w_l[0:E, 0:3 * E]                         # (E, 3E)  per-head [q|k|v] cols
        wo   = w_l[E:2 * E, 0:E]                         # (E, E)
        w1   = w_l[2 * E:3 * E, 0:nhid]                  # (E, nhid)
        w2   = w_l[3 * E:3 * E + nhid, 0:E]              # (nhid, E)
        bqkv = b_l[0:1, 0:3 * E]
        bo   = b_l[1:2, 0:E]
        b1   = b_l[2:3, 0:nhid]
        b2   = b_l[3:4, 0:E]
        ln1w, ln1b = b_l[4:5, 0:E], b_l[5:6, 0:E]
        ln2w, ln2b = b_l[6:7, 0:E], b_l[7:8, 0:E]

        # ---- self-attention: all heads & batches in ONE scores/context matmul pair ----
        qkv = jnp.dot(x.astype(bf16), wqkv,
                      preferred_element_type=jnp.float32) + bqkv    # (BS, 3E)
        # lanes are grouped per head as [q_h | k_h | v_h]; stack heads on the row axis
        qkv_st = jnp.concatenate(
            [qkv[:, h * 3 * dh:(h + 1) * 3 * dh] for h in range(nhead)],
            axis=0)                                                  # (H*BS, 3*dh)
        q = qkv_st[:, 0:dh].astype(bf16)          # 1/sqrt(dh) already folded into W_q
        k = qkv_st[:, dh:2 * dh].astype(bf16)
        v = qkv_st[:, 2 * dh:3 * dh].astype(bf16)

        s = jax.lax.dot_general(q, k, (((1,), (1,)), ((), ())),
                                preferred_element_type=jnp.float32)  # (H*BS, H*BS)
        s = s + mask                              # cross-(head,batch) entries -> -inf
        s = s - jnp.max(s, axis=-1, keepdims=True)
        p = jnp.exp(s)
        p = p * pl.reciprocal(jnp.sum(p, axis=-1, keepdims=True), approx=True)

        ctx_st = jnp.dot(p.astype(bf16), v,
                         preferred_element_type=jnp.float32)         # (H*BS, dh)
        ctx = jnp.concatenate(
            [ctx_st[h * BS:(h + 1) * BS, :] for h in range(nhead)], axis=1)  # (BS, E)
        attn = jnp.dot(ctx.astype(bf16), wo,
                       preferred_element_type=jnp.float32) + bo

        # post-norm (PyTorch default norm_first=False)
        x = layer_norm(x + attn, ln1w, ln1b)

        # ---- feed-forward ----
        hid = jnp.maximum(
            jnp.dot(x.astype(bf16), w1, preferred_element_type=jnp.float32) + b1, 0.0)
        ffn = jnp.dot(hid.astype(bf16), w2, preferred_element_type=jnp.float32) + b2
        x = layer_norm(x + ffn, ln2w, ln2b)

    # ---- decoder (lane-padded to 128 -> unmasked full-lane store) ----
    o_ref[...] = (jnp.dot(x.astype(bf16), decw_ref[...],
                          preferred_element_type=jnp.float32) + decb_ref[...])


# ----------------------- wrapper -----------------------

def _fullspec(shape):
    n = len(shape)
    return pl.BlockSpec(shape, lambda i, _n=n: (0,) * _n)


def transformer_forward(src, src_mask, emb, dec_w, dec_b, layers):
    # src: (S, B) int32 tokens; src_mask: (S, S) additive float mask
    S, B = src.shape
    E = emb.shape[1]
    H = NHEAD
    dh = E // H
    T = dec_w.shape[0]
    nhid = layers[0]['w1_t'].shape[1]
    L = len(layers)
    BS = B * S
    HBS = H * BS

    # batch-major token rows: row = b*S + s
    tok = src.T.reshape(BS, 1).astype(jnp.int32)
    pe_tiled = jnp.tile(make_pe(S, E), (B, 1))                    # (BS, E)
    emb_scaled = (emb * math.sqrt(E)).astype(jnp.bfloat16)        # fold sqrt(E) into table

    # block-diagonal (head, batch) + causal additive mask for the stacked-head layout
    blk = jnp.arange(HBS) // S                                    # group id = h*B + b
    same = blk[:, None] == blk[None, :]
    big_mask = jnp.where(same, jnp.tile(src_mask, (H * B, H * B)),
                         -jnp.inf).astype(jnp.float32)            # (HBS, HBS)

    # --- pack per-layer weights into one lane-padded slab, biases/LN into another ---
    w_rows = 3 * E + nhid
    w_slab = jnp.zeros((L, w_rows, 128), jnp.float32)
    b_slab = jnp.zeros((L, 8, 128), jnp.float32)
    inv_sqrt_dh = 1.0 / math.sqrt(dh)
    for l, p in enumerate(layers):
        wqkv_t = p['wqkv_t']                                      # (E, 3E) cols [Q|K|V]
        bqkv = p['bqkv'][0]                                       # (3E,)
        cols, bcols = [], []
        for h in range(H):
            cols.append(wqkv_t[:, h * dh:(h + 1) * dh] * inv_sqrt_dh)        # q_h (scaled)
            cols.append(wqkv_t[:, E + h * dh:E + (h + 1) * dh])              # k_h
            cols.append(wqkv_t[:, 2 * E + h * dh:2 * E + (h + 1) * dh])      # v_h
            bcols.append(bqkv[h * dh:(h + 1) * dh] * inv_sqrt_dh)
            bcols.append(bqkv[E + h * dh:E + (h + 1) * dh])
            bcols.append(bqkv[2 * E + h * dh:2 * E + (h + 1) * dh])
        wqkv_r = jnp.concatenate(cols, axis=1)                    # (E, 3E) per-head [q|k|v]
        bqkv_r = jnp.concatenate(bcols, axis=0)                   # (3E,)

        w_slab = w_slab.at[l, 0:E, 0:3 * E].set(wqkv_r)
        w_slab = w_slab.at[l, E:2 * E, 0:E].set(p['wo_t'])
        w_slab = w_slab.at[l, 2 * E:3 * E, 0:nhid].set(p['w1_t'])
        w_slab = w_slab.at[l, 3 * E:3 * E + nhid, 0:E].set(p['w2_t'])

        b_slab = b_slab.at[l, 0, 0:3 * E].set(bqkv_r)
        b_slab = b_slab.at[l, 1, 0:E].set(p['bo'][0])
        b_slab = b_slab.at[l, 2, 0:nhid].set(p['b1'][0])
        b_slab = b_slab.at[l, 3, 0:E].set(p['b2'][0])
        b_slab = b_slab.at[l, 4, 0:E].set(p['ln1w'][0])
        b_slab = b_slab.at[l, 5, 0:E].set(p['ln1b'][0])
        b_slab = b_slab.at[l, 6, 0:E].set(p['ln2w'][0])
        b_slab = b_slab.at[l, 7, 0:E].set(p['ln2b'][0])
    w_slab = w_slab.astype(jnp.bfloat16)

    # zero-pad decoder to 128 output lanes
    decw_pad = jnp.zeros((E, T_PAD), jnp.float32).at[:, :T].set(dec_w.T).astype(jnp.bfloat16)
    decb_pad = jnp.zeros((1, T_PAD), jnp.float32).at[:, :T].set(dec_b[None, :])

    inputs = (tok, pe_tiled, big_mask, emb_scaled, w_slab, b_slab, decw_pad, decb_pad)

    kernel = functools.partial(_fused_forward_kernel, nlayers=L, nhead=H,
                               batch=B, seq=S, nhid=nhid)

    out = pl.pallas_call(
        kernel,
        out_shape=jax.ShapeDtypeStruct((BS, T_PAD), jnp.float32),
        grid=(1,),
        in_specs=[_fullspec(a.shape) for a in inputs],
        out_specs=_fullspec((BS, T_PAD)),
        compiler_params=pltpu.CompilerParams(dimension_semantics=("arbitrary",)),
    )(*inputs)

    logits = out[:, :T]                                    # (BS, T)
    return logits.reshape(B, S, T).transpose(1, 0, 2)      # (S, B, ntoken)


# ----------------------- model glue -----------------------

def make_pe(S, E):
    pos = jnp.arange(S, dtype=jnp.float32)[:, None]
    div = jnp.exp(jnp.arange(0, E, 2, dtype=jnp.float32) * (-math.log(10000.0) / E))
    ang = pos * div
    return jnp.stack([jnp.sin(ang), jnp.cos(ang)], axis=-1).reshape(S, E)


def causal_mask(S):
    allowed = jnp.tril(jnp.ones((S, S), dtype=bool))
    return jnp.where(allowed, 0.0, -jnp.inf).astype(jnp.float32)


def init_params(key):
    keys = jax.random.split(key, 2 + NLAYERS)
    initrange = 0.1
    emb = jax.random.uniform(keys[0], (NTOKEN, NINP), jnp.float32, -initrange, initrange)
    dec_w = jax.random.uniform(keys[1], (NTOKEN, NINP), jnp.float32, -initrange, initrange)
    dec_b = jnp.zeros((NTOKEN,), jnp.float32)

    def u(k, shape, scale):
        return jax.random.uniform(k, shape, jnp.float32, -scale, scale)

    layers = []
    for l in range(NLAYERS):
        lk = jax.random.split(keys[2 + l], 6)
        s_e = 1.0 / math.sqrt(NINP)
        s_h = 1.0 / math.sqrt(NHID)
        wqkv = u(lk[0], (3 * NINP, NINP), s_e)
        wo = u(lk[1], (NINP, NINP), s_e)
        w1 = u(lk[2], (NHID, NINP), s_e)
        b1 = u(lk[3], (NHID,), s_e)
        w2 = u(lk[4], (NINP, NHID), s_h)
        b2 = u(lk[5], (NINP,), s_h)
        layers.append(dict(
            wqkv_t=wqkv.T, bqkv=jnp.zeros((1, 3 * NINP), jnp.float32),
            wo_t=wo.T, bo=jnp.zeros((1, NINP), jnp.float32),
            w1_t=w1.T, b1=b1[None, :],
            w2_t=w2.T, b2=b2[None, :],
            ln1w=jnp.ones((1, NINP), jnp.float32), ln1b=jnp.zeros((1, NINP), jnp.float32),
            ln2w=jnp.ones((1, NINP), jnp.float32), ln2b=jnp.zeros((1, NINP), jnp.float32),
        ))
    return emb, dec_w, dec_b, layers


# ----------------------- pure-JAX f32 reference -----------------------

def reference_forward(src, src_mask, emb, dec_w, dec_b, layers):
    S, B = src.shape
    E = emb.shape[1]
    dh = E // NHEAD
    x = jnp.take(emb, src, axis=0) * math.sqrt(E) + make_pe(S, E)[:, None, :]  # (S,B,E)

    def ln(y, w, b):
        mu = y.mean(-1, keepdims=True)
        var = ((y - mu) ** 2).mean(-1, keepdims=True)
        return (y - mu) / jnp.sqrt(var + LN_EPS) * w[0] + b[0]

    for p in layers:
        qkv = jnp.einsum('sbe,ef->sbf', x, p['wqkv_t']) + p['bqkv'][0]
        q, k, v = jnp.split(qkv, 3, axis=-1)
        sh = lambda t: t.reshape(S, B, NHEAD, dh).transpose(1, 2, 0, 3)  # (B,H,S,dh)
        q, k, v = sh(q), sh(k), sh(v)
        scores = jnp.einsum('bhsd,bhtd->bhst', q, k) / math.sqrt(dh) + src_mask
        probs = jax.nn.softmax(scores, axis=-1)
        attn = jnp.einsum('bhst,bhtd->bhsd', probs, v)
        attn = attn.transpose(2, 0, 1, 3).reshape(S, B, E)
        attn = jnp.einsum('sbe,ef->sbf', attn, p['wo_t']) + p['bo'][0]
        x = ln(x + attn, p['ln1w'], p['ln1b'])
        hid = jax.nn.relu(jnp.einsum('sbe,eh->sbh', x, p['w1_t']) + p['b1'][0])
        ffn = jnp.einsum('sbh,he->sbe', hid, p['w2_t']) + p['b2'][0]
        x = ln(x + ffn, p['ln2w'], p['ln2b'])
    return jnp.einsum('sbe,te->sbt', x, dec_w) + dec_b


# ----------------------- main -----------------------

if __name__ == "__main__":
    key = jax.random.PRNGKey(0)
    pkey, dkey = jax.random.split(key)
    emb, dec_w, dec_b, layers = init_params(pkey)

    src = jax.random.randint(dkey, (SEQ, BATCH), 0, NTOKEN, dtype=jnp.int32)
    src_mask = causal_mask(SEQ)

    out = transformer_forward(src, src_mask, emb, dec_w, dec_b, layers)
    out = jax.block_until_ready(out)

    ref = reference_forward(src, src_mask, emb, dec_w, dec_b, layers)
    assert out.shape == (SEQ, BATCH, NTOKEN)
    # Tolerance reflects bf16 MXU operands (f32 accumulation) vs. the pure-f32 reference.
    assert bool(jnp.allclose(out, ref, atol=3e-2, rtol=3e-2)), \
        float(jnp.max(jnp.abs(out - ref)))
    # TODO(synk): dropout layers are treated as identity (eval/inference mode).
    print("KERNEL_OK")
</pallas_src>

<mosaic_0001>
module attributes {stable_mosaic.version = 11 : i64} {
  func.func @_fused_forward_kernel(%arg0: i32, %arg1: memref<16x1xi32, #tpu.memory_space<vmem>>, %arg2: memref<16x32xf32, #tpu.memory_space<vmem>>, %arg3: memref<32x32xf32, #tpu.memory_space<vmem>>, %arg4: memref<32x32xbf16, #tpu.memory_space<vmem>>, %arg5: memref<2x160x128xbf16, #tpu.memory_space<vmem>>, %arg6: memref<2x8x128xf32, #tpu.memory_space<vmem>>, %arg7: memref<32x128xbf16, #tpu.memory_space<vmem>>, %arg8: memref<1x128xf32, #tpu.memory_space<vmem>>, %arg9: memref<16x128xf32, #tpu.memory_space<vmem>>) attributes {dimension_semantics = [#tpu.dimension_semantics<arbitrary>], iteration_bounds = array<i64: 1>, scalar_prefetch = 0 : i64, scratch_operands = 0 : i64, tpu.core_type = #tpu.core_type<tc>, window_params = [{pipeline_mode = #tpu.pipeline_mode<synchronous>, transform_indices = @transform_0, window_bounds = array<i64: 16, 1>}, {pipeline_mode = #tpu.pipeline_mode<synchronous>, transform_indices = @transform_1, window_bounds = array<i64: 16, 32>}, {pipeline_mode = #tpu.pipeline_mode<synchronous>, transform_indices = @transform_2, window_bounds = array<i64: 32, 32>}, {pipeline_mode = #tpu.pipeline_mode<synchronous>, transform_indices = @transform_3, window_bounds = array<i64: 32, 32>}, {pipeline_mode = #tpu.pipeline_mode<synchronous>, transform_indices = @transform_4, window_bounds = array<i64: 2, 160, 128>}, {pipeline_mode = #tpu.pipeline_mode<synchronous>, transform_indices = @transform_5, window_bounds = array<i64: 2, 8, 128>}, {pipeline_mode = #tpu.pipeline_mode<synchronous>, transform_indices = @transform_6, window_bounds = array<i64: 32, 128>}, {pipeline_mode = #tpu.pipeline_mode<synchronous>, transform_indices = @transform_7, window_bounds = array<i64: 1, 128>}, {pipeline_mode = #tpu.pipeline_mode<synchronous>, transform_indices = @transform_8, window_bounds = array<i64: 16, 128>}]} {
    %c0 = arith.constant 0 : index
    %c0_0 = arith.constant 0 : index
    %0 = vector.load %arg1[%c0, %c0_0] : memref<16x1xi32, #tpu.memory_space<vmem>>, vector<16x1xi32>
    %1 = tpu.iota {dimensions = array<i32: 1>} : vector<16x32xi32>
    %2 = vector.broadcast %0 : vector<16x1xi32> to vector<16x32xi32>
    %3 = arith.cmpi eq, %1, %2 : vector<16x32xi32>
    %4 = arith.extui %3 : vector<16x32xi1> to vector<16x32xi32>
    %5 = arith.sitofp %4 : vector<16x32xi32> to vector<16x32xf32>
    %6 = arith.truncf %5 : vector<16x32xf32> to vector<16x32xbf16>
    %c0_1 = arith.constant 0 : index
    %c0_2 = arith.constant 0 : index
    %7 = vector.load %arg4[%c0_1, %c0_2] : memref<32x32xbf16, #tpu.memory_space<vmem>>, vector<32x32xbf16>
    %cst = arith.constant dense<0.000000e+00> : vector<16x32xf32>
    %8 = tpu.matmul %6, %7, %cst {dimension_numbers = #tpu.dot_dimension_numbers<[1], [0], [0], [1], [0, 0, 1, 1], [], []>} : vector<16x32xbf16>, vector<32x32xbf16>, vector<16x32xf32> -> vector<16x32xf32>
    %c0_3 = arith.constant 0 : index
    %c0_4 = arith.constant 0 : index
    %9 = vector.load %arg2[%c0_3, %c0_4] : memref<16x32xf32, #tpu.memory_space<vmem>>, vector<16x32xf32>
    %10 = arith.addf %8, %9 : vector<16x32xf32>
    %c0_5 = arith.constant 0 : index
    %c0_6 = arith.constant 0 : index
    %11 = vector.load %arg3[%c0_5, %c0_6] : memref<32x32xf32, #tpu.memory_space<vmem>>, vector<32x32xf32>
    %c0_7 = arith.constant 0 : index
    %c0_8 = arith.constant 0 : index
    %c0_9 = arith.constant 0 : index
    %12 = vector.load %arg5[%c0_7, %c0_8, %c0_9] : memref<2x160x128xbf16, #tpu.memory_space<vmem>>, vector<1x160x128xbf16>
    %13 = vector.shape_cast %12 : vector<1x160x128xbf16> to vector<160x128xbf16>
    %c0_10 = arith.constant 0 : index
    %c0_11 = arith.constant 0 : index
    %c0_12 = arith.constant 0 : index
    %14 = vector.load %arg6[%c0_10, %c0_11, %c0_12] : memref<2x8x128xf32, #tpu.memory_space<vmem>>, vector<1x8x128xf32>
    %15 = vector.shape_cast %14 : vector<1x8x128xf32> to vector<8x128xf32>
    %16 = vector.extract_strided_slice %13 {offsets = [0, 0], sizes = [32, 96], strides = [1, 1]} : vector<160x128xbf16> to vector<32x96xbf16>
    %17 = vector.extract_strided_slice %13 {offsets = [32, 0], sizes = [32, 32], strides = [1, 1]} : vector<160x128xbf16> to vector<32x32xbf16>
    %18 = vector.extract_strided_slice %13 {offsets = [64, 0], sizes = [32, 64], strides = [1, 1]} : vector<160x128xbf16> to vector<32x64xbf16>
    %19 = vector.extract_strided_slice %13 {offsets = [96, 0], sizes = [64, 32], strides = [1, 1]} : vector<160x128xbf16> to vector<64x32xbf16>
    %20 = vector.extract_strided_slice %15 {offsets = [0, 0], sizes = [1, 96], strides = [1, 1]} : vector<8x128xf32> to vector<1x96xf32>
    %21 = vector.extract_strided_slice %15 {offsets = [1, 0], sizes = [1, 32], strides = [1, 1]} : vector<8x128xf32> to vector<1x32xf32>
    %22 = vector.extract_strided_slice %15 {offsets = [2, 0], sizes = [1, 64], strides = [1, 1]} : vector<8x128xf32> to vector<1x64xf32>
    %23 = vector.extract_strided_slice %15 {offsets = [3, 0], sizes = [1, 32], strides = [1, 1]} : vector<8x128xf32> to vector<1x32xf32>
    %24 = vector.extract_strided_slice %15 {offsets = [4, 0], sizes = [1, 32], strides = [1, 1]} : vector<8x128xf32> to vector<1x32xf32>
    %25 = vector.extract_strided_slice %15 {offsets = [5, 0], sizes = [1, 32], strides = [1, 1]} : vector<8x128xf32> to vector<1x32xf32>
    %26 = vector.extract_strided_slice %15 {offsets = [6, 0], sizes = [1, 32], strides = [1, 1]} : vector<8x128xf32> to vector<1x32xf32>
    %27 = vector.extract_strided_slice %15 {offsets = [7, 0], sizes = [1, 32], strides = [1, 1]} : vector<8x128xf32> to vector<1x32xf32>
    %28 = arith.truncf %10 : vector<16x32xf32> to vector<16x32xbf16>
    %cst_13 = arith.constant dense<0.000000e+00> : vector<16x96xf32>
    %29 = tpu.matmul %28, %16, %cst_13 {dimension_numbers = #tpu.dot_dimension_numbers<[1], [0], [0], [1], [0, 0, 1, 1], [], []>} : vector<16x32xbf16>, vector<32x96xbf16>, vector<16x96xf32> -> vector<16x96xf32>
    %30 = vector.broadcast %20 : vector<1x96xf32> to vector<16x96xf32>
    %31 = arith.addf %29, %30 : vector<16x96xf32>
    %32 = vector.extract_strided_slice %31 {offsets = [0, 0], sizes = [16, 48], strides = [1, 1]} : vector<16x96xf32> to vector<16x48xf32>
    %33 = vector.extract_strided_slice %31 {offsets = [0, 48], sizes = [16, 48], strides = [1, 1]} : vector<16x96xf32> to vector<16x48xf32>
    %34 = tpu.concatenate %32, %33 in 0 : vector<16x48xf32>, vector<16x48xf32> -> vector<32x48xf32>
    %35 = vector.extract_strided_slice %34 {offsets = [0, 0], sizes = [32, 16], strides = [1, 1]} : vector<32x48xf32> to vector<32x16xf32>
    %36 = arith.truncf %35 : vector<32x16xf32> to vector<32x16xbf16>
    %37 = vector.extract_strided_slice %34 {offsets = [0, 16], sizes = [32, 16], strides = [1, 1]} : vector<32x48xf32> to vector<32x16xf32>
    %38 = arith.truncf %37 : vector<32x16xf32> to vector<32x16xbf16>
    %39 = vector.extract_strided_slice %34 {offsets = [0, 32], sizes = [32, 16], strides = [1, 1]} : vector<32x48xf32> to vector<32x16xf32>
    %40 = arith.truncf %39 : vector<32x16xf32> to vector<32x16xbf16>
    %cst_14 = arith.constant dense<0.000000e+00> : vector<32x32xf32>
    %41 = tpu.matmul %36, %38, %cst_14 {dimension_numbers = #tpu.dot_dimension_numbers<[1], [1], [0], [0], [0, 0, 1, 0], [], []>} : vector<32x16xbf16>, vector<32x16xbf16>, vector<32x32xf32> -> vector<32x32xf32>
    %42 = arith.addf %41, %11 : vector<32x32xf32>
    %cst_15 = arith.constant dense<0xFF800000> : vector<32xf32>
    %43 = vector.multi_reduction <maximumf>, %42, %cst_15 [1] : vector<32x32xf32> to vector<32xf32>
    %44 = vector.shape_cast %43 : vector<32xf32> to vector<32x1xf32>
    %45 = vector.broadcast %44 : vector<32x1xf32> to vector<32x32xf32>
    %46 = arith.subf %42, %45 : vector<32x32xf32>
    %47 = math.exp %46 : vector<32x32xf32>
    %cst_16 = arith.constant dense<0.000000e+00> : vector<32xf32>
    %48 = vector.multi_reduction <add>, %47, %cst_16 [1] : vector<32x32xf32> to vector<32xf32>
    %49 = vector.shape_cast %48 : vector<32xf32> to vector<32x1xf32>
    %50 = tpu.reciprocal %49 {approx = true} : vector<32x1xf32> -> vector<32x1xf32>
    %51 = vector.broadcast %50 : vector<32x1xf32> to vector<32x32xf32>
    %52 = arith.mulf %47, %51 : vector<32x32xf32>
    %53 = arith.truncf %52 : vector<32x32xf32> to vector<32x32xbf16>
    %cst_17 = arith.constant dense<0.000000e+00> : vector<32x16xf32>
    %54 = tpu.matmul %53, %40, %cst_17 {dimension_numbers = #tpu.dot_dimension_numbers<[1], [0], [0], [1], [0, 0, 1, 1], [], []>} : vector<32x32xbf16>, vector<32x16xbf16>, vector<32x16xf32> -> vector<32x16xf32>
    %55 = vector.extract_strided_slice %54 {offsets = [0, 0], sizes = [16, 16], strides = [1, 1]} : vector<32x16xf32> to vector<16x16xf32>
    %56 = vector.extract_strided_slice %54 {offsets = [16, 0], sizes = [16, 16], strides = [1, 1]} : vector<32x16xf32> to vector<16x16xf32>
    %57 = tpu.concatenate %55, %56 in 1 : vector<16x16xf32>, vector<16x16xf32> -> vector<16x32xf32>
    %58 = arith.truncf %57 : vector<16x32xf32> to vector<16x32xbf16>
    %cst_18 = arith.constant dense<0.000000e+00> : vector<16x32xf32>
    %59 = tpu.matmul %58, %17, %cst_18 {dimension_numbers = #tpu.dot_dimension_numbers<[1], [0], [0], [1], [0, 0, 1, 1], [], []>} : vector<16x32xbf16>, vector<32x32xbf16>, vector<16x32xf32> -> vector<16x32xf32>
    %60 = vector.broadcast %21 : vector<1x32xf32> to vector<16x32xf32>
    %61 = arith.addf %59, %60 : vector<16x32xf32>
    %62 = arith.addf %10, %61 : vector<16x32xf32>
    %cst_19 = arith.constant dense<0.000000e+00> : vector<16xf32>
    %63 = vector.multi_reduction <add>, %62, %cst_19 [1] : vector<16x32xf32> to vector<16xf32>
    %64 = vector.shape_cast %63 : vector<16xf32> to vector<16x1xf32>
    %cst_20 = arith.constant 3.200000e+01 : f32
    %65 = vector.broadcast %cst_20 : f32 to vector<16x1xf32>
    %66 = arith.divf %64, %65 : vector<16x1xf32>
    %67 = vector.broadcast %66 : vector<16x1xf32> to vector<16x32xf32>
    %68 = arith.subf %62, %67 : vector<16x32xf32>
    %69 = arith.mulf %68, %68 : vector<16x32xf32>
    %cst_21 = arith.constant dense<0.000000e+00> : vector<16xf32>
    %70 = vector.multi_reduction <add>, %69, %cst_21 [1] : vector<16x32xf32> to vector<16xf32>
    %71 = vector.shape_cast %70 : vector<16xf32> to vector<16x1xf32>
    %cst_22 = arith.constant 3.200000e+01 : f32
    %72 = vector.broadcast %cst_22 : f32 to vector<16x1xf32>
    %73 = arith.divf %71, %72 : vector<16x1xf32>
    %74 = vector.broadcast %66 : vector<16x1xf32> to vector<16x32xf32>
    %75 = arith.subf %62, %74 : vector<16x32xf32>
    %cst_23 = arith.constant 9.99999974E-6 : f32
    %76 = vector.broadcast %cst_23 : f32 to vector<16x1xf32>
    %77 = arith.addf %73, %76 : vector<16x1xf32>
    %78 = math.rsqrt %77 : vector<16x1xf32>
    %79 = vector.broadcast %78 : vector<16x1xf32> to vector<16x32xf32>
    %80 = arith.mulf %75, %79 : vector<16x32xf32>
    %81 = vector.broadcast %24 : vector<1x32xf32> to vector<16x32xf32>
    %82 = arith.mulf %80, %81 : vector<16x32xf32>
    %83 = vector.broadcast %25 : vector<1x32xf32> to vector<16x32xf32>
    %84 = arith.addf %82, %83 : vector<16x32xf32>
    %85 = arith.truncf %84 : vector<16x32xf32> to vector<16x32xbf16>
    %cst_24 = arith.constant dense<0.000000e+00> : vector<16x64xf32>
    %86 = tpu.matmul %85, %18, %cst_24 {dimension_numbers = #tpu.dot_dimension_numbers<[1], [0], [0], [1], [0, 0, 1, 1], [], []>} : vector<16x32xbf16>, vector<32x64xbf16>, vector<16x64xf32> -> vector<16x64xf32>
    %87 = vector.broadcast %22 : vector<1x64xf32> to vector<16x64xf32>
    %88 = arith.addf %86, %87 : vector<16x64xf32>
    %cst_25 = arith.constant 0.000000e+00 : f32
    %89 = vector.broadcast %cst_25 : f32 to vector<16x64xf32>
    %90 = arith.maximumf %88, %89 : vector<16x64xf32>
    %91 = arith.truncf %90 : vector<16x64xf32> to vector<16x64xbf16>
    %cst_26 = arith.constant dense<0.000000e+00> : vector<16x32xf32>
    %92 = tpu.matmul %91, %19, %cst_26 {dimension_numbers = #tpu.dot_dimension_numbers<[1], [0], [0], [1], [0, 0, 1, 1], [], []>} : vector<16x64xbf16>, vector<64x32xbf16>, vector<16x32xf32> -> vector<16x32xf32>
    %93 = vector.broadcast %23 : vector<1x32xf32> to vector<16x32xf32>
    %94 = arith.addf %92, %93 : vector<16x32xf32>
    %95 = arith.addf %84, %94 : vector<16x32xf32>
    %cst_27 = arith.constant dense<0.000000e+00> : vector<16xf32>
    %96 = vector.multi_reduction <add>, %95, %cst_27 [1] : vector<16x32xf32> to vector<16xf32>
    %97 = vector.shape_cast %96 : vector<16xf32> to vector<16x1xf32>
    %cst_28 = arith.constant 3.200000e+01 : f32
    %98 = vector.broadcast %cst_28 : f32 to vector<16x1xf32>
    %99 = arith.divf %97, %98 : vector<16x1xf32>
    %100 = vector.broadcast %99 : vector<16x1xf32> to vector<16x32xf32>
    %101 = arith.subf %95, %100 : vector<16x32xf32>
    %102 = arith.mulf %101, %101 : vector<16x32xf32>
    %cst_29 = arith.constant dense<0.000000e+00> : vector<16xf32>
    %103 = vector.multi_reduction <add>, %102, %cst_29 [1] : vector<16x32xf32> to vector<16xf32>
    %104 = vector.shape_cast %103 : vector<16xf32> to vector<16x1xf32>
    %cst_30 = arith.constant 3.200000e+01 : f32
    %105 = vector.broadcast %cst_30 : f32 to vector<16x1xf32>
    %106 = arith.divf %104, %105 : vector<16x1xf32>
    %107 = vector.broadcast %99 : vector<16x1xf32> to vector<16x32xf32>
    %108 = arith.subf %95, %107 : vector<16x32xf32>
    %cst_31 = arith.constant 9.99999974E-6 : f32
    %109 = vector.broadcast %cst_31 : f32 to vector<16x1xf32>
    %110 = arith.addf %106, %109 : vector<16x1xf32>
    %111 = math.rsqrt %110 : vector<16x1xf32>
    %112 = vector.broadcast %111 : vector<16x1xf32> to vector<16x32xf32>
    %113 = arith.mulf %108, %112 : vector<16x32xf32>
    %114 = vector.broadcast %26 : vector<1x32xf32> to vector<16x32xf32>
    %115 = arith.mulf %113, %114 : vector<16x32xf32>
    %116 = vector.broadcast %27 : vector<1x32xf32> to vector<16x32xf32>
    %117 = arith.addf %115, %116 : vector<16x32xf32>
    %c1 = arith.constant 1 : index
    %c0_32 = arith.constant 0 : index
    %c0_33 = arith.constant 0 : index
    %118 = vector.load %arg5[%c1, %c0_32, %c0_33] : memref<2x160x128xbf16, #tpu.memory_space<vmem>>, vector<1x160x128xbf16>
    %119 = vector.shape_cast %118 : vector<1x160x128xbf16> to vector<160x128xbf16>
    %c1_34 = arith.constant 1 : index
    %c0_35 = arith.constant 0 : index
    %c0_36 = arith.constant 0 : index
    %120 = vector.load %arg6[%c1_34, %c0_35, %c0_36] : memref<2x8x128xf32, #tpu.memory_space<vmem>>, vector<1x8x128xf32>
    %121 = vector.shape_cast %120 : vector<1x8x128xf32> to vector<8x128xf32>
    %122 = vector.extract_strided_slice %119 {offsets = [0, 0], sizes = [32, 96], strides = [1, 1]} : vector<160x128xbf16> to vector<32x96xbf16>
    %123 = vector.extract_strided_slice %119 {offsets = [32, 0], sizes = [32, 32], strides = [1, 1]} : vector<160x128xbf16> to vector<32x32xbf16>
    %124 = vector.extract_strided_slice %119 {offsets = [64, 0], sizes = [32, 64], strides = [1, 1]} : vector<160x128xbf16> to vector<32x64xbf16>
    %125 = vector.extract_strided_slice %119 {offsets = [96, 0], sizes = [64, 32], strides = [1, 1]} : vector<160x128xbf16> to vector<64x32xbf16>
    %126 = vector.extract_strided_slice %121 {offsets = [0, 0], sizes = [1, 96], strides = [1, 1]} : vector<8x128xf32> to vector<1x96xf32>
    %127 = vector.extract_strided_slice %121 {offsets = [1, 0], sizes = [1, 32], strides = [1, 1]} : vector<8x128xf32> to vector<1x32xf32>
    %128 = vector.extract_strided_slice %121 {offsets = [2, 0], sizes = [1, 64], strides = [1, 1]} : vector<8x128xf32> to vector<1x64xf32>
    %129 = vector.extract_strided_slice %121 {offsets = [3, 0], sizes = [1, 32], strides = [1, 1]} : vector<8x128xf32> to vector<1x32xf32>
    %130 = vector.extract_strided_slice %121 {offsets = [4, 0], sizes = [1, 32], strides = [1, 1]} : vector<8x128xf32> to vector<1x32xf32>
    %131 = vector.extract_strided_slice %121 {offsets = [5, 0], sizes = [1, 32], strides = [1, 1]} : vector<8x128xf32> to vector<1x32xf32>
    %132 = vector.extract_strided_slice %121 {offsets = [6, 0], sizes = [1, 32], strides = [1, 1]} : vector<8x128xf32> to vector<1x32xf32>
    %133 = vector.extract_strided_slice %121 {offsets = [7, 0], sizes = [1, 32], strides = [1, 1]} : vector<8x128xf32> to vector<1x32xf32>
    %134 = arith.truncf %117 : vector<16x32xf32> to vector<16x32xbf16>
    %cst_37 = arith.constant dense<0.000000e+00> : vector<16x96xf32>
    %135 = tpu.matmul %134, %122, %cst_37 {dimension_numbers = #tpu.dot_dimension_numbers<[1], [0], [0], [1], [0, 0, 1, 1], [], []>} : vector<16x32xbf16>, vector<32x96xbf16>, vector<16x96xf32> -> vector<16x96xf32>
    %136 = vector.broadcast %126 : vector<1x96xf32> to vector<16x96xf32>
    %137 = arith.addf %135, %136 : vector<16x96xf32>
    %138 = vector.extract_strided_slice %137 {offsets = [0, 0], sizes = [16, 48], strides = [1, 1]} : vector<16x96xf32> to vector<16x48xf32>
    %139 = vector.extract_strided_slice %137 {offsets = [0, 48], sizes = [16, 48], strides = [1, 1]} : vector<16x96xf32> to vector<16x48xf32>
    %140 = tpu.concatenate %138, %139 in 0 : vector<16x48xf32>, vector<16x48xf32> -> vector<32x48xf32>
    %141 = vector.extract_strided_slice %140 {offsets = [0, 0], sizes = [32, 16], strides = [1, 1]} : vector<32x48xf32> to vector<32x16xf32>
    %142 = arith.truncf %141 : vector<32x16xf32> to vector<32x16xbf16>
    %143 = vector.extract_strided_slice %140 {offsets = [0, 16], sizes = [32, 16], strides = [1, 1]} : vector<32x48xf32> to vector<32x16xf32>
    %144 = arith.truncf %143 : vector<32x16xf32> to vector<32x16xbf16>
    %145 = vector.extract_strided_slice %140 {offsets = [0, 32], sizes = [32, 16], strides = [1, 1]} : vector<32x48xf32> to vector<32x16xf32>
    %146 = arith.truncf %145 : vector<32x16xf32> to vector<32x16xbf16>
    %cst_38 = arith.constant dense<0.000000e+00> : vector<32x32xf32>
    %147 = tpu.matmul %142, %144, %cst_38 {dimension_numbers = #tpu.dot_dimension_numbers<[1], [1], [0], [0], [0, 0, 1, 0], [], []>} : vector<32x16xbf16>, vector<32x16xbf16>, vector<32x32xf32> -> vector<32x32xf32>
    %148 = arith.addf %147, %11 : vector<32x32xf32>
    %cst_39 = arith.constant dense<0xFF800000> : vector<32xf32>
    %149 = vector.multi_reduction <maximumf>, %148, %cst_39 [1] : vector<32x32xf32> to vector<32xf32>
    %150 = vector.shape_cast %149 : vector<32xf32> to vector<32x1xf32>
    %151 = vector.broadcast %150 : vector<32x1xf32> to vector<32x32xf32>
    %152 = arith.subf %148, %151 : vector<32x32xf32>
    %153 = math.exp %152 : vector<32x32xf32>
    %cst_40 = arith.constant dense<0.000000e+00> : vector<32xf32>
    %154 = vector.multi_reduction <add>, %153, %cst_40 [1] : vector<32x32xf32> to vector<32xf32>
    %155 = vector.shape_cast %154 : vector<32xf32> to vector<32x1xf32>
    %156 = tpu.reciprocal %155 {approx = true} : vector<32x1xf32> -> vector<32x1xf32>
    %157 = vector.broadcast %156 : vector<32x1xf32> to vector<32x32xf32>
    %158 = arith.mulf %153, %157 : vector<32x32xf32>
    %159 = arith.truncf %158 : vector<32x32xf32> to vector<32x32xbf16>
    %cst_41 = arith.constant dense<0.000000e+00> : vector<32x16xf32>
    %160 = tpu.matmul %159, %146, %cst_41 {dimension_numbers = #tpu.dot_dimension_numbers<[1], [0], [0], [1], [0, 0, 1, 1], [], []>} : vector<32x32xbf16>, vector<32x16xbf16>, vector<32x16xf32> -> vector<32x16xf32>
    %161 = vector.extract_strided_slice %160 {offsets = [0, 0], sizes = [16, 16], strides = [1, 1]} : vector<32x16xf32> to vector<16x16xf32>
    %162 = vector.extract_strided_slice %160 {offsets = [16, 0], sizes = [16, 16], strides = [1, 1]} : vector<32x16xf32> to vector<16x16xf32>
    %163 = tpu.concatenate %161, %162 in 1 : vector<16x16xf32>, vector<16x16xf32> -> vector<16x32xf32>
    %164 = arith.truncf %163 : vector<16x32xf32> to vector<16x32xbf16>
    %cst_42 = arith.constant dense<0.000000e+00> : vector<16x32xf32>
    %165 = tpu.matmul %164, %123, %cst_42 {dimension_numbers = #tpu.dot_dimension_numbers<[1], [0], [0], [1], [0, 0, 1, 1], [], []>} : vector<16x32xbf16>, vector<32x32xbf16>, vector<16x32xf32> -> vector<16x32xf32>
    %166 = vector.broadcast %127 : vector<1x32xf32> to vector<16x32xf32>
    %167 = arith.addf %165, %166 : vector<16x32xf32>
    %168 = arith.addf %117, %167 : vector<16x32xf32>
    %cst_43 = arith.constant dense<0.000000e+00> : vector<16xf32>
    %169 = vector.multi_reduction <add>, %168, %cst_43 [1] : vector<16x32xf32> to vector<16xf32>
    %170 = vector.shape_cast %169 : vector<16xf32> to vector<16x1xf32>
    %cst_44 = arith.constant 3.200000e+01 : f32
    %171 = vector.broadcast %cst_44 : f32 to vector<16x1xf32>
    %172 = arith.divf %170, %171 : vector<16x1xf32>
    %173 = vector.broadcast %172 : vector<16x1xf32> to vector<16x32xf32>
    %174 = arith.subf %168, %173 : vector<16x32xf32>
    %175 = arith.mulf %174, %174 : vector<16x32xf32>
    %cst_45 = arith.constant dense<0.000000e+00> : vector<16xf32>
    %176 = vector.multi_reduction <add>, %175, %cst_45 [1] : vector<16x32xf32> to vector<16xf32>
    %177 = vector.shape_cast %176 : vector<16xf32> to vector<16x1xf32>
    %cst_46 = arith.constant 3.200000e+01 : f32
    %178 = vector.broadcast %cst_46 : f32 to vector<16x1xf32>
    %179 = arith.divf %177, %178 : vector<16x1xf32>
    %180 = vector.broadcast %172 : vector<16x1xf32> to vector<16x32xf32>
    %181 = arith.subf %168, %180 : vector<16x32xf32>
    %cst_47 = arith.constant 9.99999974E-6 : f32
    %182 = vector.broadcast %cst_47 : f32 to vector<16x1xf32>
    %183 = arith.addf %179, %182 : vector<16x1xf32>
    %184 = math.rsqrt %183 : vector<16x1xf32>
    %185 = vector.broadcast %184 : vector<16x1xf32> to vector<16x32xf32>
    %186 = arith.mulf %181, %185 : vector<16x32xf32>
    %187 = vector.broadcast %130 : vector<1x32xf32> to vector<16x32xf32>
    %188 = arith.mulf %186, %187 : vector<16x32xf32>
    %189 = vector.broadcast %131 : vector<1x32xf32> to vector<16x32xf32>
    %190 = arith.addf %188, %189 : vector<16x32xf32>
    %191 = arith.truncf %190 : vector<16x32xf32> to vector<16x32xbf16>
    %cst_48 = arith.constant dense<0.000000e+00> : vector<16x64xf32>
    %192 = tpu.matmul %191, %124, %cst_48 {dimension_numbers = #tpu.dot_dimension_numbers<[1], [0], [0], [1], [0, 0, 1, 1], [], []>} : vector<16x32xbf16>, vector<32x64xbf16>, vector<16x64xf32> -> vector<16x64xf32>
    %193 = vector.broadcast %128 : vector<1x64xf32> to vector<16x64xf32>
    %194 = arith.addf %192, %193 : vector<16x64xf32>
    %cst_49 = arith.constant 0.000000e+00 : f32
    %195 = vector.broadcast %cst_49 : f32 to vector<16x64xf32>
    %196 = arith.maximumf %194, %195 : vector<16x64xf32>
    %197 = arith.truncf %196 : vector<16x64xf32> to vector<16x64xbf16>
    %cst_50 = arith.constant dense<0.000000e+00> : vector<16x32xf32>
    %198 = tpu.matmul %197, %125, %cst_50 {dimension_numbers = #tpu.dot_dimension_numbers<[1], [0], [0], [1], [0, 0, 1, 1], [], []>} : vector<16x64xbf16>, vector<64x32xbf16>, vector<16x32xf32> -> vector<16x32xf32>
    %199 = vector.broadcast %129 : vector<1x32xf32> to vector<16x32xf32>
    %200 = arith.addf %198, %199 : vector<16x32xf32>
    %201 = arith.addf %190, %200 : vector<16x32xf32>
    %cst_51 = arith.constant dense<0.000000e+00> : vector<16xf32>
    %202 = vector.multi_reduction <add>, %201, %cst_51 [1] : vector<16x32xf32> to vector<16xf32>
    %203 = vector.shape_cast %202 : vector<16xf32> to vector<16x1xf32>
    %cst_52 = arith.constant 3.200000e+01 : f32
    %204 = vector.broadcast %cst_52 : f32 to vector<16x1xf32>
    %205 = arith.divf %203, %204 : vector<16x1xf32>
    %206 = vector.broadcast %205 : vector<16x1xf32> to vector<16x32xf32>
    %207 = arith.subf %201, %206 : vector<16x32xf32>
    %208 = arith.mulf %207, %207 : vector<16x32xf32>
    %cst_53 = arith.constant dense<0.000000e+00> : vector<16xf32>
    %209 = vector.multi_reduction <add>, %208, %cst_53 [1] : vector<16x32xf32> to vector<16xf32>
    %210 = vector.shape_cast %209 : vector<16xf32> to vector<16x1xf32>
    %cst_54 = arith.constant 3.200000e+01 : f32
    %211 = vector.broadcast %cst_54 : f32 to vector<16x1xf32>
    %212 = arith.divf %210, %211 : vector<16x1xf32>
    %213 = vector.broadcast %205 : vector<16x1xf32> to vector<16x32xf32>
    %214 = arith.subf %201, %213 : vector<16x32xf32>
    %cst_55 = arith.constant 9.99999974E-6 : f32
    %215 = vector.broadcast %cst_55 : f32 to vector<16x1xf32>
    %216 = arith.addf %212, %215 : vector<16x1xf32>
    %217 = math.rsqrt %216 : vector<16x1xf32>
    %218 = vector.broadcast %217 : vector<16x1xf32> to vector<16x32xf32>
    %219 = arith.mulf %214, %218 : vector<16x32xf32>
    %220 = vector.broadcast %132 : vector<1x32xf32> to vector<16x32xf32>
    %221 = arith.mulf %219, %220 : vector<16x32xf32>
    %222 = vector.broadcast %133 : vector<1x32xf32> to vector<16x32xf32>
    %223 = arith.addf %221, %222 : vector<16x32xf32>
    %224 = arith.truncf %223 : vector<16x32xf32> to vector<16x32xbf16>
    %c0_56 = arith.constant 0 : index
    %c0_57 = arith.constant 0 : index
    %225 = vector.load %arg7[%c0_56, %c0_57] : memref<32x128xbf16, #tpu.memory_space<vmem>>, vector<32x128xbf16>
    %cst_58 = arith.constant dense<0.000000e+00> : vector<16x128xf32>
    %226 = tpu.matmul %224, %225, %cst_58 {dimension_numbers = #tpu.dot_dimension_numbers<[1], [0], [0], [1], [0, 0, 1, 1], [], []>} : vector<16x32xbf16>, vector<32x128xbf16>, vector<16x128xf32> -> vector<16x128xf32>
    %c0_59 = arith.constant 0 : index
    %c0_60 = arith.constant 0 : index
    %227 = vector.load %arg8[%c0_59, %c0_60] : memref<1x128xf32, #tpu.memory_space<vmem>>, vector<1x128xf32>
    %228 = vector.broadcast %227 : vector<1x128xf32> to vector<16x128xf32>
    %229 = arith.addf %226, %228 : vector<16x128xf32>
    %c0_61 = arith.constant 0 : index
    %c0_62 = arith.constant 0 : index
    %230 = vector.load %arg9[%c0_61, %c0_62] : memref<16x128xf32, #tpu.memory_space<vmem>>, vector<16x128xf32>
    tpu.vector_store %arg9[%c0_61, %c0_62], %229 {strides = array<i32>} : memref<16x128xf32, #tpu.memory_space<vmem>>, vector<16x128xf32>,
    return
  }
  func.func @transform_0(%arg0: i32) -> (i32, i32) {
    %c0_i32 = arith.constant 0 : i32
    %c0_i32_0 = arith.constant 0 : i32
    %c0_i32_1 = arith.constant 0 : i32
    return %c0_i32, %c0_i32_0 : i32, i32
  }
  func.func @transform_1(%arg0: i32) -> (i32, i32) {
    %c0_i32 = arith.constant 0 : i32
    %c0_i32_0 = arith.constant 0 : i32
    %c0_i32_1 = arith.constant 0 : i32
    return %c0_i32, %c0_i32_0 : i32, i32
  }
  func.func @transform_2(%arg0: i32) -> (i32, i32) {
    %c0_i32 = arith.constant 0 : i32
    %c0_i32_0 = arith.constant 0 : i32
    %c0_i32_1 = arith.constant 0 : i32
    return %c0_i32, %c0_i32_0 : i32, i32
  }
  func.func @transform_3(%arg0: i32) -> (i32, i32) {
    %c0_i32 = arith.constant 0 : i32
    %c0_i32_0 = arith.constant 0 : i32
    %c0_i32_1 = arith.constant 0 : i32
    return %c0_i32, %c0_i32_0 : i32, i32
  }
  func.func @transform_4(%arg0: i32) -> (i32, i32, i32) {
    %c0_i32 = arith.constant 0 : i32
    %c0_i32_0 = arith.constant 0 : i32
    %c0_i32_1 = arith.constant 0 : i32
    %c0_i32_2 = arith.constant 0 : i32
    return %c0_i32, %c0_i32_0, %c0_i32_1 : i32, i32, i32
  }
  func.func @transform_5(%arg0: i32) -> (i32, i32, i32) {
    %c0_i32 = arith.constant 0 : i32
    %c0_i32_0 = arith.constant 0 : i32
    %c0_i32_1 = arith.constant 0 : i32
    %c0_i32_2 = arith.constant 0 : i32
    return %c0_i32, %c0_i32_0, %c0_i32_1 : i32, i32, i32
  }
  func.func @transform_6(%arg0: i32) -> (i32, i32) {
    %c0_i32 = arith.constant 0 : i32
    %c0_i32_0 = arith.constant 0 : i32
    %c0_i32_1 = arith.constant 0 : i32
    return %c0_i32, %c0_i32_0 : i32, i32
  }
  func.func @transform_7(%arg0: i32) -> (i32, i32) {
    %c0_i32 = arith.constant 0 : i32
    %c0_i32_0 = arith.constant 0 : i32
    %c0_i32_1 = arith.constant 0 : i32
    return %c0_i32, %c0_i32_0 : i32, i32
  }
  func.func @transform_8(%arg0: i32) -> (i32, i32) {
    %c0_i32 = arith.constant 0 : i32
    %c0_i32_0 = arith.constant 0 : i32
    %c0_i32_1 = arith.constant 0 : i32
    return %c0_i32, %c0_i32_0 : i32, i32
  }
}

</mosaic_0001>

<llo_original>
// kernel: tpu_custom_call.1
$region0: #{tpu_custom_call.1}
  #allocation0 [shape = 'u32[]', space=smem, size = 0x4, offset = 0x4, fixed_abs, tag = 'smem constant byte address 0x4 - core index']
  #allocation1 [shape = 'u32[72,128]{1,0:T(1,128)}', space=vmem, size = 0x9000, scoped, tag = 'internal scratch']
  %s0 = inlined_call_operand.vmem [shape: s32[16,1], index: 0, kind: input, shape index: {}]
  %s1 = inlined_call_operand.vmem [shape: f32[16,32], index: 1, kind: input, shape index: {}]
  %s2 = inlined_call_operand.hbm [shape: f32[32,32], index: 2, kind: input, shape index: {}]
  %s3 = inlined_call_operand.hbm [shape: bf16[32,32], index: 3, kind: input, shape index: {}]
  %s4 = inlined_call_operand.hbm [shape: bf16[2,160,128], index: 4, kind: input, shape index: {}]
  %s5 = inlined_call_operand.hbm [shape: f32[2,8,128], index: 5, kind: input, shape index: {}]
  %s6 = inlined_call_operand.hbm [shape: bf16[32,128], index: 6, kind: input, shape index: {}]
  %s7 = inlined_call_operand.vmem [shape: f32[1,128], index: 7, kind: input, shape index: {}]
  %s8 = inlined_call_operand.hbm [shape: f32[16,128], index: 8, kind: output, shape index: {}]
  %s9 = sld [smem:[#allocation0]]
  $region62: #{tpu_custom_call.1} parent=0
    _
  %s11 = ssub.s32 1, %s9
  %s12 = scalar_select 0, %s11, %s9
  $region1: #{tpu_custom_call.1} parent=0
    #allocation2 [shape = 'u8[16384]{0}', space=vmem, size = 0x4000, scoped, tag = 'input window, operand 2, single buffered']
    #allocation3 [shape = 's32[1]{0}', space=sflag, size = 0x4, scoped, tag = 'scoped memory for tpu_custom_call.1']
    #allocation4 [shape = 's32[1]{0}', space=sflag, size = 0x4, scoped, tag = 'scoped memory for tpu_custom_call.1']
    #allocation5 [shape = 'u8[8192]{0}', space=vmem, size = 0x2000, scoped, tag = 'input window, operand 3, single buffered']
    #allocation6 [shape = 's32[1]{0}', space=sflag, size = 0x4, scoped, tag = 'scoped memory for tpu_custom_call.1']
    #allocation7 [shape = 'u8[81920]{0}', space=vmem, size = 0x14000, scoped, tag = 'input window, operand 4, single buffered']
    #allocation8 [shape = 'u8[8192]{0}', space=vmem, size = 0x2000, scoped, tag = 'input window, operand 5, single buffered']
    #allocation9 [shape = 's32[1]{0}', space=sflag, size = 0x4, scoped, tag = 'scoped memory for tpu_custom_call.1']
    #allocation10 [shape = 'u8[8192]{0}', space=vmem, size = 0x2000, scoped, tag = 'input window, operand 6, single buffered']
    #allocation11 [shape = 'u8[8192]{0}', space=vmem, size = 0x2000, scoped, tag = 'output window, operand 0, single buffered']
    %13 = vsyncpa [#allocation3], 0
    %14 = vsyncpa [#allocation6], 0
    %15 = vsyncpa [#allocation9], 0
    %16 = vsyncpa [#allocation4], 0
    // Predicated region
    $region2: #{tpu_custom_call.1} parent=1 // pred_check
      _
    $region3: #{tpu_custom_call.1} parent=1 // pred_check_branch
      %18 = sbr.rel (0) target = $region5
    $region4: #{tpu_custom_call.1} parent=1 // pred_region
      _
    $region5: #{tpu_custom_call.1} parent=1 // pred_fallthru
      _
    // Predicated region
    $region6: #{tpu_custom_call.1} parent=1 // pred_check
      _
    $region7: #{tpu_custom_call.1} parent=1 // pred_check_branch
      %20 = sbr.rel (0) target = $region9
    $region8: #{tpu_custom_call.1} parent=1 // pred_region
      _
    $region9: #{tpu_custom_call.1} parent=1 // pred_fallthru
      _
    // Predicated region
    $region10: #{tpu_custom_call.1} parent=1 // pred_check
      _
    $region11: #{tpu_custom_call.1} parent=1 // pred_check_branch
      %22 = sbr.rel (0) target = $region13
    $region12: #{tpu_custom_call.1} parent=1 // pred_region
      %24 = vsyncadd [#allocation3], 0
      %s25 = sshll.u32 %s2, 4
      %s26 = int_to_ptr.hbm [resolvable:$true] %s25
      %s27 = sshll.u32 [#allocation2], 4
      %s28 = int_to_ptr.vmem [resolvable:$true] %s27
      %33 = dma.hbm_to_vmem [thread:$0]  %s26, 512, %s28, [#allocation3], 128, 128, 8
    $region13: #{tpu_custom_call.1} parent=1 // pred_fallthru
      _
    // Predicated region
    $region14: #{tpu_custom_call.1} parent=1 // pred_check
      _
    $region15: #{tpu_custom_call.1} parent=1 // pred_check_branch
      %35 = sbr.rel (0) target = $region17
    $region16: #{tpu_custom_call.1} parent=1 // pred_region
      %37 = vsyncadd [#allocation6], 0
      %s38 = sshll.u32 %s3, 4
      %s39 = int_to_ptr.hbm [resolvable:$true] %s38
      %s40 = sshll.u32 [#allocation5], 4
      %s41 = int_to_ptr.vmem [resolvable:$true] %s40
      %46 = dma.hbm_to_vmem [thread:$0]  %s39, 256, %s41, [#allocation6], 64, 64, 4
    $region17: #{tpu_custom_call.1} parent=1 // pred_fallthru
      _
    // Predicated region
    $region18: #{tpu_custom_call.1} parent=1 // pred_check
      _
    $region19: #{tpu_custom_call.1} parent=1 // pred_check_branch
      %48 = sbr.rel (0) target = $region21
    $region20: #{tpu_custom_call.1} parent=1 // pred_region
      %50 = vsyncadd [#allocation6], 0
      %s51 = sshll.u32 %s4, 4
      %s52 = int_to_ptr.hbm [resolvable:$true] %s51
      %s53 = sshll.u32 [#allocation7], 4
      %s54 = int_to_ptr.vmem [resolvable:$true] %s53
      %59 = dma.hbm_to_vmem [thread:$0]  %s52, 2560, %s54, [#allocation6], 64, 64, 4
    $region21: #{tpu_custom_call.1} parent=1 // pred_fallthru
      _
    // Predicated region
    $region22: #{tpu_custom_call.1} parent=1 // pred_check
      _
    $region23: #{tpu_custom_call.1} parent=1 // pred_check_branch
      %61 = sbr.rel (0) target = $region25
    $region24: #{tpu_custom_call.1} parent=1 // pred_region
      %63 = vsyncadd [#allocation9], 0
      %s64 = sshll.u32 %s5, 4
      %s65 = int_to_ptr.hbm [resolvable:$true] %s64
      %s66 = sshll.u32 [#allocation8], 4
      %s67 = int_to_ptr.vmem [resolvable:$true] %s66
      %72 = dma.hbm_to_vmem [thread:$0]  %s65, 256, %s67, [#allocation9], 128, 128, 8
    $region25: #{tpu_custom_call.1} parent=1 // pred_fallthru
      _
    // Predicated region
    $region26: #{tpu_custom_call.1} parent=1 // pred_check
      _
    $region27: #{tpu_custom_call.1} parent=1 // pred_check_branch
      %74 = sbr.rel (0) target = $region29
    $region28: #{tpu_custom_call.1} parent=1 // pred_region
      %76 = vsyncadd [#allocation9], 0
      %s77 = sshll.u32 %s6, 4
      %s78 = int_to_ptr.hbm [resolvable:$true] %s77
      %s79 = sshll.u32 [#allocation10], 4
      %s80 = int_to_ptr.vmem [resolvable:$true] %s79
      %85 = dma.hbm_to_vmem [thread:$0]  %s78, 256, %s80, [#allocation9], 64, 64, 4
    $region29: #{tpu_custom_call.1} parent=1 // pred_fallthru
      _
    // Predicated region
    $region30: #{tpu_custom_call.1} parent=1 // pred_check
      _
    $region31: #{tpu_custom_call.1} parent=1 // pred_check_branch
      %87 = sbr.rel (0) target = $region33
    $region32: #{tpu_custom_call.1} parent=1 // pred_region
      _
    $region33: #{tpu_custom_call.1} parent=1 // pred_fallthru
      _
    // Predicated region
    $region34: #{tpu_custom_call.1} parent=1 // pred_check
      _
    $region35: #{tpu_custom_call.1} parent=1 // pred_check_branch
      %89 = sbr.rel (0) target = $region37
    $region36: #{tpu_custom_call.1} parent=1 // pred_region
      %91 = dma.done [#allocation3], 512
    $region37: #{tpu_custom_call.1} parent=1 // pred_fallthru
      _
    // Predicated region
    $region38: #{tpu_custom_call.1} parent=1 // pred_check
      _
    $region39: #{tpu_custom_call.1} parent=1 // pred_check_branch
      %93 = sbr.rel (0) target = $region41
    $region40: #{tpu_custom_call.1} parent=1 // pred_region
      %95 = dma.done [#allocation6], 256
    $region41: #{tpu_custom_call.1} parent=1 // pred_fallthru
      _
    // Predicated region
    $region42: #{tpu_custom_call.1} parent=1 // pred_check
      _
    $region43: #{tpu_custom_call.1} parent=1 // pred_check_branch
      %97 = sbr.rel (0) target = $region45
    $region44: #{tpu_custom_call.1} parent=1 // pred_region
      %99 = dma.done [#allocation6], 2560
    $region45: #{tpu_custom_call.1} parent=1 // pred_fallthru
      _
    // Predicated region
    $region46: #{tpu_custom_call.1} parent=1 // pred_check
      _
    $region47: #{tpu_custom_call.1} parent=1 // pred_check_branch
      %101 = sbr.rel (0) target = $region49
    $region48: #{tpu_custom_call.1} parent=1 // pred_region
      %103 = dma.done [#allocation9], 256
    $region49: #{tpu_custom_call.1} parent=1 // pred_fallthru
      _
    // Predicated region
    $region50: #{tpu_custom_call.1} parent=1 // pred_check
      _
    $region51: #{tpu_custom_call.1} parent=1 // pred_check_branch
      %105 = sbr.rel (0) target = $region53
    $region52: #{tpu_custom_call.1} parent=1 // pred_region
      %107 = dma.done [#allocation9], 256
    $region53: #{tpu_custom_call.1} parent=1 // pred_fallthru
      _
    %v109 = vld [vmem:[%s0] sm:$0xff]
    %v110 = vld [vmem:[%s0 + $0x8] sm:$0xff]
    %v111 = vlaneseq
    %v112 = vand.u32 %v111, 127
    %113 = vset.pattern.permute.xlu0 0
    %114 = vperm.xlu0 %113, %v109
    %v115 = vpop.permute.xlu0 %114
    %116 = vset.pattern.permute.xlu0 0
    %117 = vperm.xlu0 %116, %v110
    %v118 = vpop.permute.xlu0 %117
    %vm119 = vcmp.eq.s32.totalorder %v112, %v115
    %vm120 = vcmp.eq.s32.totalorder %v112, %v118
    %v121 = vsel %vm119, 1, 0
    %v122 = vsel %vm120, 1, 0
    %v123 = vcvt.s32.f32 %v121
    %v124 = vcvt.s32.f32 %v122
    %v125 = vpack.c.bf16 %v124, %v123
    %v126 = vld [vmem:[#allocation5] sm:$0xf]
    %v127 = vld [vmem:[#allocation5 + $0x4] sm:$0xf]
    %v128 = vld [vmem:[#allocation5 + $0x8] sm:$0xf]
    %v129 = vld [vmem:[#allocation5 + $0xc] sm:$0xf]
    %v130 = vld [vmem:[%s1] sm:$0xff]
    %v131 = vld [vmem:[%s1 + $0x8] sm:$0xff]
    %v136 = vunpack.c.l.b16 %v126
    %v137 = vunpack.c.l.b16 %v127
    %v138 = vunpack.c.l.b16 %v128
    %v139 = vunpack.c.l.b16 %v129
    %v140 = vpack.c.b16 %v137, %v136
    %v141 = vpack.c.b16 %v139, %v138
    %vm144 = vcmask 261120
    %v146 = vsel %vm144, %v125, 0
    %148 = vmatpush.bf16.msra.mxu0 0
    %149 = vmatpush.bf16.msra.mxu0 0
    %150 = vmatpush.bf16.msra.mxu0 0
    %151 = vmatpush.bf16.msra.mxu0 0
    %152 = vmatpush.bf16.msra.mxu0 0
    %153 = vmatpush.bf16.msra.mxu0 0
    %154 = vmatpush.bf16.msra.mxu0 %v141
    %155 = vmatpush.bf16.msra.mxu0 %v140
    %156 = vmatmul.bf16.gmra.mxu0 %v146
    %v157 = vpop.f32.mrf.mxu0
    %v158 = vadd.f32 %v130, %v157
    %v159 = vpop.f32.mrf.mxu0
    %v160 = vadd.f32 %v131, %v159
    %161 = vdwg.mxu0
    %v162 = vld [vmem:[#allocation2] sm:$0xff]
    %v163 = vld [vmem:[#allocation2 + $0x8] sm:$0xff]
    %v164 = vld [vmem:[#allocation2 + $0x10] sm:$0xff]
    %v165 = vld [vmem:[#allocation2 + $0x18] sm:$0xff]
    %v166 = vld [vmem:[#allocation7] sm:$0xf]
    %v167 = vld [vmem:[#allocation7 + $0x4] sm:$0xf]
    %v168 = vld [vmem:[#allocation7 + $0x8] sm:$0xf]
    %v169 = vld [vmem:[#allocation7 + $0xc] sm:$0xf]
    %v170 = vld [vmem:[#allocation7 + $0x10] sm:$0xf]
    %v171 = vld [vmem:[#allocation7 + $0x14] sm:$0xf]
    %v172 = vld [vmem:[#allocation7 + $0x18] sm:$0xf]
    %v173 = vld [vmem:[#allocation7 + $0x1c] sm:$0xf]
    %v174 = vld [vmem:[#allocation7 + $0x20] sm:$0xf]
    %v175 = vld [vmem:[#allocation7 + $0x24] sm:$0xf]
    %v176 = vld [vmem:[#allocation7 + $0x28] sm:$0xf]
    %v177 = vld [vmem:[#allocation7 + $0x2c] sm:$0xf]
    %v178 = vld [vmem:[#allocation7 + $0x30] sm:$0xf]
    %v179 = vld [vmem:[#allocation7 + $0x34] sm:$0xf]
    %v180 = vld [vmem:[#allocation7 + $0x38] sm:$0xf]
    %v181 = vld [vmem:[#allocation7 + $0x3c] sm:$0xf]
    %v182 = vld [vmem:[#allocation7 + $0x40] sm:$0xf]
    %v183 = vld [vmem:[#allocation7 + $0x44] sm:$0xf]
    %v184 = vld [vmem:[#allocation7 + $0x48] sm:$0xf]
    %v185 = vld [vmem:[#allocation7 + $0x4c] sm:$0xf]
    %v186 = vld [vmem:[#allocation8] sm:$0xff]
    %v187 = vpack.c.bf16 %v160, %v158
    %v188 = vperm.slane %v186, 0
    %v193 = vunpack.c.l.b16 %v166
    %v194 = vunpack.c.l.b16 %v167
    %v195 = vunpack.c.l.b16 %v168
    %v196 = vunpack.c.l.b16 %v169
    %v197 = vpack.c.b16 %v194, %v193
    %v198 = vpack.c.b16 %v196, %v195
    %v202 = vsel %vm144, %v187, 0
    %204 = vmatpush.bf16.msra.mxu0 0
    %205 = vmatpush.bf16.msra.mxu0 0
    %206 = vmatpush.bf16.msra.mxu0 0
    %207 = vmatpush.bf16.msra.mxu0 0
    %208 = vmatpush.bf16.msra.mxu0 0
    %209 = vmatpush.bf16.msra.mxu0 0
    %210 = vmatpush.bf16.msra.mxu0 %v198
    %211 = vmatpush.bf16.msra.mxu0 %v197
    %212 = vmatmul.bf16.gmra.mxu0 %v202
    %v213 = vpop.f32.mrf.mxu0
    %v214 = vadd.f32 %v188, %v213
    %v215 = vpop.f32.mrf.mxu0
    %v216 = vadd.f32 %v188, %v215
    %217 = vdwg.mxu0
    %220 = vrot.lane.b32.xlu0 %v214, 80
    %v221 = vpop.permute.xlu0 %220
    %222 = vrot.lane.b32.xlu0 %v216, 80
    %v223 = vpop.permute.xlu0 %222
    %v226 = vpack.c.bf16 %v216, %v214
    %v227 = vpack.c.bf16 %v223, %v221
    %230 = vrot.lane.b32.xlu0 %v226, 112
    %v231 = vpop.permute.xlu0 %230
    %232 = vrot.lane.b32.xlu0 %v227, 112
    %v233 = vpop.permute.xlu0 %232
    %vm234 = vcmask 130048
    %v236 = vsel %vm234, %v226, 0
    %v239 = vsel %vm234, %v227, 0
    %v242 = vsel %vm234, %v231, 0
    %v245 = vsel %vm234, %v233, 0
    %247 = vmatpush.bf16.xpose.msra.mxu0 0
    %248 = vmatpush.bf16.xpose.msra.mxu0 0
    %249 = vmatpush.bf16.xpose.msra.mxu0 0
    %250 = vmatpush.bf16.xpose.msra.mxu0 0
    %251 = vmatpush.bf16.xpose.msra.mxu0 0
    %252 = vmatpush.bf16.xpose.msra.mxu0 0
    %253 = vmatpush.bf16.xpose.msra.mxu0 %v245
    %254 = vmatpush.bf16.xpose.msra.mxu0 %v242
    %255 = vmatmul.bf16.gmra.mxu0 %v236
    %v256 = vpop.f32.mrf.mxu0
    %v257 = vadd.f32 %v162, %v256
    %v258 = vpop.f32.mrf.mxu0
    %v259 = vadd.f32 %v163, %v258
    %260 = vmatmul.bf16.gmra.mxu0 %v239
    %v261 = vpop.f32.mrf.mxu0
    %v262 = vadd.f32 %v164, %v261
    %v263 = vpop.f32.mrf.mxu0
    %v264 = vadd.f32 %v165, %v263
    %265 = vdwg.mxu0
    %v266 = vsel %vm144, %v257, -inf
    %267 = vmax.xlane.f32.xlu0 %v266
    %v268 = vpop.xlane.xlu0 %267
    %v269 = vsel %vm144, %v259, -inf
    %270 = vmax.xlane.f32.xlu0 %v269
    %v271 = vpop.xlane.xlu0 %270
    %v272 = vsel %vm144, %v262, -inf
    %273 = vmax.xlane.f32.xlu0 %v272
    %v274 = vpop.xlane.xlu0 %273
    %v275 = vsel %vm144, %v264, -inf
    %276 = vmax.xlane.f32.xlu0 %v275
    %v277 = vpop.xlane.xlu0 %276
    %v278 = vsub.f32 %v257, %v268
    %v279 = vsub.f32 %v259, %v271
    %v280 = vsub.f32 %v262, %v274
    %v281 = vsub.f32 %v264, %v277
    %v282 = vmul.f32 %v278, 1.442695
    %v283 = vpow.pop %v282
    %v284 = vmul.f32 %v279, 1.442695
    %v285 = vpow.pop %v284
    %v286 = vmul.f32 %v280, 1.442695
    %v287 = vpow.pop %v286
    %v288 = vmul.f32 %v281, 1.442695
    %v289 = vpow.pop %v288
    %v290 = vsel %vm144, %v283, 0.0
    %291 = vadd.xlane.f32.xlu0 %v290
    %v292 = vpop.xlane.xlu0 %291
    %v293 = vsel %vm144, %v285, 0.0
    %294 = vadd.xlane.f32.xlu0 %v293
    %v295 = vpop.xlane.xlu0 %294
    %v296 = vsel %vm144, %v287, 0.0
    %297 = vadd.xlane.f32.xlu0 %v296
    %v298 = vpop.xlane.xlu0 %297
    %v299 = vsel %vm144, %v289, 0.0
    %300 = vadd.xlane.f32.xlu0 %v299
    %v301 = vpop.xlane.xlu0 %300
    %v302 = vrcp.pop %v292
    %v303 = vrcp.pop %v295
    %v304 = vrcp.pop %v298
    %v305 = vrcp.pop %v301
    %v306 = vmul.f32 %v283, %v302
    %v307 = vmul.f32 %v285, %v303
    %v308 = vmul.f32 %v287, %v304
    %v309 = vmul.f32 %v289, %v305
    %v310 = vpack.c.bf16 %v307, %v306
    %v311 = vpack.c.bf16 %v309, %v308
    %312 = vrot.lane.b32.xlu0 %v226, 96
    %v313 = vpop.permute.xlu0 %312
    %314 = vrot.lane.b32.xlu0 %v227, 96
    %v315 = vpop.permute.xlu0 %314
    %v319 = vsel %vm144, %v310, 0
    %v322 = vsel %vm144, %v311, 0
    %324 = vmatpush.bf16.msra.mxu0 0
    %325 = vmatpush.bf16.msra.mxu0 0
    %326 = vmatpush.bf16.msra.mxu0 0
    %327 = vmatpush.bf16.msra.mxu0 0
    %328 = vmatpush.bf16.msra.mxu0 0
    %329 = vmatpush.bf16.msra.mxu0 0
    %330 = vmatpush.bf16.msra.mxu0 %v315
    %331 = vmatpush.bf16.msra.mxu0 %v313
    %332 = vmatmul.bf16.gmra.mxu0 %v319
    %v333 = vpop.f32.mrf.mxu0
    %v334 = vadd.f32 0.0, %v333
    %v335 = vpop.f32.mrf.mxu0
    %v336 = vadd.f32 0.0, %v335
    %337 = vmatmul.bf16.gmra.mxu0 %v322
    %v338 = vpop.f32.mrf.mxu0
    %v339 = vadd.f32 0.0, %v338
    %v340 = vpop.f32.mrf.mxu0
    %v341 = vadd.f32 0.0, %v340
    %342 = vdwg.mxu0
    %345 = vrot.lane.b32.xlu0 %v339, 16
    %v346 = vpop.permute.xlu0 %345
    %347 = vrot.lane.b32.xlu0 %v341, 16
    %v348 = vpop.permute.xlu0 %347
    %v351 = vsel %vm234, %v334, %v346
    %v352 = vsel %vm234, %v336, %v348
    %v353 = vpack.c.bf16 %v352, %v351
    %v354 = vperm.slane %v186, 1
    %v359 = vunpack.c.l.b16 %v170
    %v360 = vunpack.c.l.b16 %v171
    %v361 = vunpack.c.l.b16 %v172
    %v362 = vunpack.c.l.b16 %v173
    %v363 = vpack.c.b16 %v360, %v359
    %v364 = vpack.c.b16 %v362, %v361
    %v368 = vsel %vm144, %v353, 0
    %370 = vmatpush.bf16.msra.mxu0 0
    %371 = vmatpush.bf16.msra.mxu0 0
    %372 = vmatpush.bf16.msra.mxu0 0
    %373 = vmatpush.bf16.msra.mxu0 0
    %374 = vmatpush.bf16.msra.mxu0 0
    %375 = vmatpush.bf16.msra.mxu0 0
    %376 = vmatpush.bf16.msra.mxu0 %v364
    %377 = vmatpush.bf16.msra.mxu0 %v363
    %378 = vmatmul.bf16.gmra.mxu0 %v368
    %v379 = vpop.f32.mrf.mxu0
    %v380 = vadd.f32 %v354, %v379
    %v381 = vpop.f32.mrf.mxu0
    %v382 = vadd.f32 %v354, %v381
    %383 = vdwg.mxu0
    %v384 = vadd.f32 %v158, %v380
    %v385 = vadd.f32 %v160, %v382
    %v386 = vsel %vm144, %v384, 0.0
    %387 = vadd.xlane.f32.xlu0 %v386
    %v388 = vpop.xlane.xlu0 %387
    %v389 = vsel %vm144, %v385, 0.0
    %390 = vadd.xlane.f32.xlu0 %v389
    %v391 = vpop.xlane.xlu0 %390
    %v392 = vrcp.pop 32.0
    %v393 = vmul.f32 32.0, %v392
    %v394 = vsub.f32 1.0, %v393
    %v395 = vmul.f32 %v392, %v394
    %v396 = vadd.f32 %v392, %v395
    %vm397 = vweird.f32 %v392
    %v398 = vsel %vm397, %v392, %v396
    %v399 = vmul.f32 %v388, %v398
    %v400 = vmul.f32 %v391, %v398
    %v401 = vsub.f32 %v384, %v399
    %v402 = vsub.f32 %v385, %v400
    %v403 = vmul.f32 %v401, %v401
    %v404 = vmul.f32 %v402, %v402
    %v405 = vsel %vm144, %v403, 0.0
    %406 = vadd.xlane.f32.xlu0 %v405
    %v407 = vpop.xlane.xlu0 %406
    %v408 = vsel %vm144, %v404, 0.0
    %409 = vadd.xlane.f32.xlu0 %v408
    %v410 = vpop.xlane.xlu0 %409
    %v411 = vmul.f32 %v407, %v398
    %v412 = vmul.f32 %v410, %v398
    %v413 = vadd.f32 %v411, 1e-05
    %v414 = vadd.f32 %v412, 1e-05
    %v415 = vrsqrt.pop %v413
    %v416 = vmul.f32 %v415, %v413
    %v417 = vmul.f32 %v416, %v415
    %v418 = vmul.f32 0.5, %v417
    %v419 = vsub.f32 1.5, %v418
    %v420 = vmul.f32 %v415, %v419
    %vm421 = vweird.f32 %v413
    %vm422 = vweird.f32 %v415
    %vm423 = vmor %vm421, %vm422
    %v424 = vsel %vm423, %v415, %v420
    %v425 = vrsqrt.pop %v414
    %v426 = vmul.f32 %v425, %v414
    %v427 = vmul.f32 %v426, %v425
    %v428 = vmul.f32 0.5, %v427
    %v429 = vsub.f32 1.5, %v428
    %v430 = vmul.f32 %v425, %v429
    %vm431 = vweird.f32 %v414
    %vm432 = vweird.f32 %v425
    %vm433 = vmor %vm431, %vm432
    %v434 = vsel %vm433, %v425, %v430
    %v435 = vmul.f32 %v401, %v424
    %v436 = vmul.f32 %v402, %v434
    %v437 = vperm.slane %v186, 4
    %v438 = vmul.f32 %v435, %v437
    %v439 = vmul.f32 %v436, %v437
    %v440 = vperm.slane %v186, 5
    %v441 = vadd.f32 %v438, %v440
    %v442 = vadd.f32 %v439, %v440
    %v443 = vpack.c.bf16 %v442, %v441
    %v444 = vperm.slane %v186, 2
    %v449 = vunpack.c.l.b16 %v174
    %v450 = vunpack.c.l.b16 %v175
    %v451 = vunpack.c.l.b16 %v176
    %v452 = vunpack.c.l.b16 %v177
    %v453 = vpack.c.b16 %v450, %v449
    %v454 = vpack.c.b16 %v452, %v451
    %v458 = vsel %vm144, %v443, 0
    %460 = vmatpush.bf16.msra.mxu0 0
    %461 = vmatpush.bf16.msra.mxu0 0
    %462 = vmatpush.bf16.msra.mxu0 0
    %463 = vmatpush.bf16.msra.mxu0 0
    %464 = vmatpush.bf16.msra.mxu0 0
    %465 = vmatpush.bf16.msra.mxu0 0
    %466 = vmatpush.bf16.msra.mxu0 %v454
    %467 = vmatpush.bf16.msra.mxu0 %v453
    %468 = vmatmul.bf16.gmra.mxu0 %v458
    %v469 = vpop.f32.mrf.mxu0
    %v470 = vadd.f32 %v444, %v469
    %v471 = vpop.f32.mrf.mxu0
    %v472 = vadd.f32 %v444, %v471
    %473 = vdwg.mxu0
    %v474 = vmax.f32 %v470, 0.0
    %v475 = vmax.f32 %v472, 0.0
    %v476 = vpack.c.bf16 %v475, %v474
    %v477 = vperm.slane %v186, 3
    %v486 = vunpack.c.l.b16 %v178
    %v487 = vunpack.c.l.b16 %v179
    %v488 = vunpack.c.l.b16 %v180
    %v489 = vunpack.c.l.b16 %v181
    %v490 = vunpack.c.l.b16 %v182
    %v491 = vunpack.c.l.b16 %v183
    %v492 = vunpack.c.l.b16 %v184
    %v493 = vunpack.c.l.b16 %v185
    %v494 = vpack.c.b16 %v487, %v486
    %v495 = vpack.c.b16 %v489, %v488
    %v496 = vpack.c.b16 %v491, %v490
    %v497 = vpack.c.b16 %v493, %v492
    %vm502 = vcmask 523264
    %v504 = vsel %vm502, %v476, 0
    %506 = vmatpush.bf16.msra.mxu0 0
    %507 = vmatpush.bf16.msra.mxu0 0
    %508 = vmatpush.bf16.msra.mxu0 0
    %509 = vmatpush.bf16.msra.mxu0 0
    %510 = vmatpush.bf16.msra.mxu0 %v497
    %511 = vmatpush.bf16.msra.mxu0 %v496
    %512 = vmatpush.bf16.msra.mxu0 %v495
    %513 = vmatpush.bf16.msra.mxu0 %v494
    %514 = vmatmul.bf16.gmra.mxu0 %v504
    %v515 = vpop.f32.mrf.mxu0
    %v516 = vadd.f32 %v477, %v515
    %v517 = vpop.f32.mrf.mxu0
    %v518 = vadd.f32 %v477, %v517
    %519 = vdwg.mxu0
    %v520 = vadd.f32 %v441, %v516
    %v521 = vadd.f32 %v442, %v518
    %v522 = vsel %vm144, %v520, 0.0
    %523 = vadd.xlane.f32.xlu0 %v522
    %v524 = vpop.xlane.xlu0 %523
    %v525 = vsel %vm144, %v521, 0.0
    %526 = vadd.xlane.f32.xlu0 %v525
    %v527 = vpop.xlane.xlu0 %526
    %v528 = vmul.f32 %v524, %v398
    %v529 = vmul.f32 %v527, %v398
    %v530 = vsub.f32 %v520, %v528
    %v531 = vsub.f32 %v521, %v529
    %v532 = vmul.f32 %v530, %v530
    %v533 = vmul.f32 %v531, %v531
    %v534 = vsel %vm144, %v532, 0.0
    %535 = vadd.xlane.f32.xlu0 %v534
    %v536 = vpop.xlane.xlu0 %535
    %v537 = vsel %vm144, %v533, 0.0
    %538 = vadd.xlane.f32.xlu0 %v537
    %v539 = vpop.xlane.xlu0 %538
    %v540 = vmul.f32 %v536, %v398
    %v541 = vmul.f32 %v539, %v398
    %v542 = vadd.f32 %v540, 1e-05
    %v543 = vadd.f32 %v541, 1e-05
    %v544 = vrsqrt.pop %v542
    %v545 = vmul.f32 %v544, %v542
    %v546 = vmul.f32 %v545, %v544
    %v547 = vmul.f32 0.5, %v546
    %v548 = vsub.f32 1.5, %v547
    %v549 = vmul.f32 %v544, %v548
    %vm550 = vweird.f32 %v542
    %vm551 = vweird.f32 %v544
    %vm552 = vmor %vm550, %vm551
    %v553 = vsel %vm552, %v544, %v549
    %v554 = vrsqrt.pop %v543
    %v555 = vmul.f32 %v554, %v543
    %v556 = vmul.f32 %v555, %v554
    %v557 = vmul.f32 0.5, %v556
    %v558 = vsub.f32 1.5, %v557
    %v559 = vmul.f32 %v554, %v558
    %vm560 = vweird.f32 %v543
    %vm561 = vweird.f32 %v554
    %vm562 = vmor %vm560, %vm561
    %v563 = vsel %vm562, %v554, %v559
    %v564 = vmul.f32 %v530, %v553
    %v565 = vmul.f32 %v531, %v563
    %v566 = vperm.slane %v186, 6
    %v567 = vmul.f32 %v564, %v566
    %v568 = vmul.f32 %v565, %v566
    %v569 = vperm.slane %v186, 7
    %v570 = vadd.f32 %v567, %v569
    %v571 = vadd.f32 %v568, %v569
    %s572 = scalar_lea.vmem [#allocation7], 80
    %v573 = vld [vmem:[%s572] sm:$0xf]
    %v574 = vld [vmem:[%s572 + $0x4] sm:$0xf]
    %v575 = vld [vmem:[%s572 + $0x8] sm:$0xf]
    %v576 = vld [vmem:[%s572 + $0xc] sm:$0xf]
    %v577 = vld [vmem:[%s572 + $0x10] sm:$0xf]
    %v578 = vld [vmem:[%s572 + $0x14] sm:$0xf]
    %v579 = vld [vmem:[%s572 + $0x18] sm:$0xf]
    %v580 = vld [vmem:[%s572 + $0x1c] sm:$0xf]
    %v581 = vld [vmem:[%s572 + $0x20] sm:$0xf]
    %v582 = vld [vmem:[%s572 + $0x24] sm:$0xf]
    %v583 = vld [vmem:[%s572 + $0x28] sm:$0xf]
    %v584 = vld [vmem:[%s572 + $0x2c] sm:$0xf]
    %v585 = vld [vmem:[%s572 + $0x30] sm:$0xf]
    %v586 = vld [vmem:[%s572 + $0x34] sm:$0xf]
    %v587 = vld [vmem:[%s572 + $0x38] sm:$0xf]
    %v588 = vld [vmem:[%s572 + $0x3c] sm:$0xf]
    %v589 = vld [vmem:[%s572 + $0x40] sm:$0xf]
    %v590 = vld [vmem:[%s572 + $0x44] sm:$0xf]
    %v591 = vld [vmem:[%s572 + $0x48] sm:$0xf]
    %v592 = vld [vmem:[%s572 + $0x4c] sm:$0xf]
    %s593 = scalar_lea.vmem [#allocation8], 8
    %v594 = vld [vmem:[%s593] sm:$0xff]
    %v595 = vpack.c.bf16 %v571, %v570
    %v596 = vperm.slane %v594, 0
    %v601 = vunpack.c.l.b16 %v573
    %v602 = vunpack.c.l.b16 %v574
    %v603 = vunpack.c.l.b16 %v575
    %v604 = vunpack.c.l.b16 %v576
    %v605 = vpack.c.b16 %v602, %v601
    %v606 = vpack.c.b16 %v604, %v603
    %v610 = vsel %vm144, %v595, 0
    %612 = vmatpush.bf16.msra.mxu0 0
    %613 = vmatpush.bf16.msra.mxu0 0
    %614 = vmatpush.bf16.msra.mxu0 0
    %615 = vmatpush.bf16.msra.mxu0 0
    %616 = vmatpush.bf16.msra.mxu0 0
    %617 = vmatpush.bf16.msra.mxu0 0
    %618 = vmatpush.bf16.msra.mxu0 %v606
    %619 = vmatpush.bf16.msra.mxu0 %v605
    %620 = vmatmul.bf16.gmra.mxu0 %v610
    %v621 = vpop.f32.mrf.mxu0
    %v622 = vadd.f32 %v596, %v621
    %v623 = vpop.f32.mrf.mxu0
    %v624 = vadd.f32 %v596, %v623
    %625 = vdwg.mxu0
    %628 = vrot.lane.b32.xlu0 %v622, 80
    %v629 = vpop.permute.xlu0 %628
    %630 = vrot.lane.b32.xlu0 %v624, 80
    %v631 = vpop.permute.xlu0 %630
    %v634 = vpack.c.bf16 %v624, %v622
    %v635 = vpack.c.bf16 %v631, %v629
    %638 = vrot.lane.b32.xlu0 %v634, 112
    %v639 = vpop.permute.xlu0 %638
    %640 = vrot.lane.b32.xlu0 %v635, 112
    %v641 = vpop.permute.xlu0 %640
    %v643 = vsel %vm234, %v634, 0
    %v646 = vsel %vm234, %v635, 0
    %v649 = vsel %vm234, %v639, 0
    %v652 = vsel %vm234, %v641, 0
    %654 = vmatpush.bf16.xpose.msra.mxu0 0
    %655 = vmatpush.bf16.xpose.msra.mxu0 0
    %656 = vmatpush.bf16.xpose.msra.mxu0 0
    %657 = vmatpush.bf16.xpose.msra.mxu0 0
    %658 = vmatpush.bf16.xpose.msra.mxu0 0
    %659 = vmatpush.bf16.xpose.msra.mxu0 0
    %660 = vmatpush.bf16.xpose.msra.mxu0 %v652
    %661 = vmatpush.bf16.xpose.msra.mxu0 %v649
    %662 = vmatmul.bf16.gmra.mxu0 %v643
    %v663 = vpop.f32.mrf.mxu0
    %v664 = vadd.f32 %v162, %v663
    %v665 = vpop.f32.mrf.mxu0
    %v666 = vadd.f32 %v163, %v665
    %667 = vmatmul.bf16.gmra.mxu0 %v646
    %v668 = vpop.f32.mrf.mxu0
    %v669 = vadd.f32 %v164, %v668
    %v670 = vpop.f32.mrf.mxu0
    %v671 = vadd.f32 %v165, %v670
    %672 = vdwg.mxu0
    %v673 = vsel %vm144, %v664, -inf
    %674 = vmax.xlane.f32.xlu0 %v673
    %v675 = vpop.xlane.xlu0 %674
    %v676 = vsel %vm144, %v666, -inf
    %677 = vmax.xlane.f32.xlu0 %v676
    %v678 = vpop.xlane.xlu0 %677
    %v679 = vsel %vm144, %v669, -inf
    %680 = vmax.xlane.f32.xlu0 %v679
    %v681 = vpop.xlane.xlu0 %680
    %v682 = vsel %vm144, %v671, -inf
    %683 = vmax.xlane.f32.xlu0 %v682
    %v684 = vpop.xlane.xlu0 %683
    %v685 = vsub.f32 %v664, %v675
    %v686 = vsub.f32 %v666, %v678
    %v687 = vsub.f32 %v669, %v681
    %v688 = vsub.f32 %v671, %v684
    %v689 = vmul.f32 %v685, 1.442695
    %v690 = vpow.pop %v689
    %v691 = vmul.f32 %v686, 1.442695
    %v692 = vpow.pop %v691
    %v693 = vmul.f32 %v687, 1.442695
    %v694 = vpow.pop %v693
    %v695 = vmul.f32 %v688, 1.442695
    %v696 = vpow.pop %v695
    %v697 = vsel %vm144, %v690, 0.0
    %698 = vadd.xlane.f32.xlu0 %v697
    %v699 = vpop.xlane.xlu0 %698
    %v700 = vsel %vm144, %v692, 0.0
    %701 = vadd.xlane.f32.xlu0 %v700
    %v702 = vpop.xlane.xlu0 %701
    %v703 = vsel %vm144, %v694, 0.0
    %704 = vadd.xlane.f32.xlu0 %v703
    %v705 = vpop.xlane.xlu0 %704
    %v706 = vsel %vm144, %v696, 0.0
    %707 = vadd.xlane.f32.xlu0 %v706
    %v708 = vpop.xlane.xlu0 %707
    %v709 = vrcp.pop %v699
    %v710 = vrcp.pop %v702
    %v711 = vrcp.pop %v705
    %v712 = vrcp.pop %v708
    %v713 = vmul.f32 %v690, %v709
    %v714 = vmul.f32 %v692, %v710
    %v715 = vmul.f32 %v694, %v711
    %v716 = vmul.f32 %v696, %v712
    %v717 = vpack.c.bf16 %v714, %v713
    %v718 = vpack.c.bf16 %v716, %v715
    %719 = vrot.lane.b32.xlu0 %v634, 96
    %v720 = vpop.permute.xlu0 %719
    %721 = vrot.lane.b32.xlu0 %v635, 96
    %v722 = vpop.permute.xlu0 %721
    %v726 = vsel %vm144, %v717, 0
    %v729 = vsel %vm144, %v718, 0
    %731 = vmatpush.bf16.msra.mxu0 0
    %732 = vmatpush.bf16.msra.mxu0 0
    %733 = vmatpush.bf16.msra.mxu0 0
    %734 = vmatpush.bf16.msra.mxu0 0
    %735 = vmatpush.bf16.msra.mxu0 0
    %736 = vmatpush.bf16.msra.mxu0 0
    %737 = vmatpush.bf16.msra.mxu0 %v722
    %738 = vmatpush.bf16.msra.mxu0 %v720
    %739 = vmatmul.bf16.gmra.mxu0 %v726
    %v740 = vpop.f32.mrf.mxu0
    %v741 = vadd.f32 0.0, %v740
    %v742 = vpop.f32.mrf.mxu0
    %v743 = vadd.f32 0.0, %v742
    %744 = vmatmul.bf16.gmra.mxu0 %v729
    %v745 = vpop.f32.mrf.mxu0
    %v746 = vadd.f32 0.0, %v745
    %v747 = vpop.f32.mrf.mxu0
    %v748 = vadd.f32 0.0, %v747
    %749 = vdwg.mxu0
    %752 = vrot.lane.b32.xlu0 %v746, 16
    %v753 = vpop.permute.xlu0 %752
    %754 = vrot.lane.b32.xlu0 %v748, 16
    %v755 = vpop.permute.xlu0 %754
    %v758 = vsel %vm234, %v741, %v753
    %v759 = vsel %vm234, %v743, %v755
    %v760 = vpack.c.bf16 %v759, %v758
    %v761 = vperm.slane %v594, 1
    %v766 = vunpack.c.l.b16 %v577
    %v767 = vunpack.c.l.b16 %v578
    %v768 = vunpack.c.l.b16 %v579
    %v769 = vunpack.c.l.b16 %v580
    %v770 = vpack.c.b16 %v767, %v766
    %v771 = vpack.c.b16 %v769, %v768
    %v775 = vsel %vm144, %v760, 0
    %777 = vmatpush.bf16.msra.mxu0 0
    %778 = vmatpush.bf16.msra.mxu0 0
    %779 = vmatpush.bf16.msra.mxu0 0
    %780 = vmatpush.bf16.msra.mxu0 0
    %781 = vmatpush.bf16.msra.mxu0 0
    %782 = vmatpush.bf16.msra.mxu0 0
    %783 = vmatpush.bf16.msra.mxu0 %v771
    %784 = vmatpush.bf16.msra.mxu0 %v770
    %785 = vmatmul.bf16.gmra.mxu0 %v775
    %v786 = vpop.f32.mrf.mxu0
    %v787 = vadd.f32 %v761, %v786
    %v788 = vpop.f32.mrf.mxu0
    %v789 = vadd.f32 %v761, %v788
    %790 = vdwg.mxu0
    %v791 = vadd.f32 %v570, %v787
    %v792 = vadd.f32 %v571, %v789
    %v793 = vsel %vm144, %v791, 0.0
    %794 = vadd.xlane.f32.xlu0 %v793
    %v795 = vpop.xlane.xlu0 %794
    %v796 = vsel %vm144, %v792, 0.0
    %797 = vadd.xlane.f32.xlu0 %v796
    %v798 = vpop.xlane.xlu0 %797
    %v799 = vmul.f32 %v795, %v398
    %v800 = vmul.f32 %v798, %v398
    %v801 = vsub.f32 %v791, %v799
    %v802 = vsub.f32 %v792, %v800
    %v803 = vmul.f32 %v801, %v801
    %v804 = vmul.f32 %v802, %v802
    %v805 = vsel %vm144, %v803, 0.0
    %806 = vadd.xlane.f32.xlu0 %v805
    %v807 = vpop.xlane.xlu0 %806
    %v808 = vsel %vm144, %v804, 0.0
    %809 = vadd.xlane.f32.xlu0 %v808
    %v810 = vpop.xlane.xlu0 %809
    %v811 = vmul.f32 %v807, %v398
    %v812 = vmul.f32 %v810, %v398
    %v813 = vadd.f32 %v811, 1e-05
    %v814 = vadd.f32 %v812, 1e-05
    %v815 = vrsqrt.pop %v813
    %v816 = vmul.f32 %v815, %v813
    %v817 = vmul.f32 %v816, %v815
    %v818 = vmul.f32 0.5, %v817
    %v819 = vsub.f32 1.5, %v818
    %v820 = vmul.f32 %v815, %v819
    %vm821 = vweird.f32 %v813
    %vm822 = vweird.f32 %v815
    %vm823 = vmor %vm821, %vm822
    %v824 = vsel %vm823, %v815, %v820
    %v825 = vrsqrt.pop %v814
    %v826 = vmul.f32 %v825, %v814
    %v827 = vmul.f32 %v826, %v825
    %v828 = vmul.f32 0.5, %v827
    %v829 = vsub.f32 1.5, %v828
    %v830 = vmul.f32 %v825, %v829
    %vm831 = vweird.f32 %v814
    %vm832 = vweird.f32 %v825
    %vm833 = vmor %vm831, %vm832
    %v834 = vsel %vm833, %v825, %v830
    %v835 = vmul.f32 %v801, %v824
    %v836 = vmul.f32 %v802, %v834
    %v837 = vperm.slane %v594, 4
    %v838 = vmul.f32 %v835, %v837
    %v839 = vmul.f32 %v836, %v837
    %v840 = vperm.slane %v594, 5
    %v841 = vadd.f32 %v838, %v840
    %v842 = vadd.f32 %v839, %v840
    %v843 = vpack.c.bf16 %v842, %v841
    %v844 = vperm.slane %v594, 2
    %v849 = vunpack.c.l.b16 %v581
    %v850 = vunpack.c.l.b16 %v582
    %v851 = vunpack.c.l.b16 %v583
    %v852 = vunpack.c.l.b16 %v584
    %v853 = vpack.c.b16 %v850, %v849
    %v854 = vpack.c.b16 %v852, %v851
    %v858 = vsel %vm144, %v843, 0
    %860 = vmatpush.bf16.msra.mxu0 0
    %861 = vmatpush.bf16.msra.mxu0 0
    %862 = vmatpush.bf16.msra.mxu0 0
    %863 = vmatpush.bf16.msra.mxu0 0
    %864 = vmatpush.bf16.msra.mxu0 0
    %865 = vmatpush.bf16.msra.mxu0 0
    %866 = vmatpush.bf16.msra.mxu0 %v854
    %867 = vmatpush.bf16.msra.mxu0 %v853
    %868 = vmatmul.bf16.gmra.mxu0 %v858
    %v869 = vpop.f32.mrf.mxu0
    %v870 = vadd.f32 %v844, %v869
    %v871 = vpop.f32.mrf.mxu0
    %v872 = vadd.f32 %v844, %v871
    %873 = vdwg.mxu0
    %v874 = vmax.f32 %v870, 0.0
    %v875 = vmax.f32 %v872, 0.0
    %v876 = vpack.c.bf16 %v875, %v874
    %v877 = vperm.slane %v594, 3
    %v886 = vunpack.c.l.b16 %v585
    %v887 = vunpack.c.l.b16 %v586
    %v888 = vunpack.c.l.b16 %v587
    %v889 = vunpack.c.l.b16 %v588
    %v890 = vunpack.c.l.b16 %v589
    %v891 = vunpack.c.l.b16 %v590
    %v892 = vunpack.c.l.b16 %v591
    %v893 = vunpack.c.l.b16 %v592
    %v894 = vpack.c.b16 %v887, %v886
    %v895 = vpack.c.b16 %v889, %v888
    %v896 = vpack.c.b16 %v891, %v890
    %v897 = vpack.c.b16 %v893, %v892
    %v903 = vsel %vm502, %v876, 0
    %905 = vmatpush.bf16.msra.mxu0 0
    %906 = vmatpush.bf16.msra.mxu0 0
    %907 = vmatpush.bf16.msra.mxu0 0
    %908 = vmatpush.bf16.msra.mxu0 0
    %909 = vmatpush.bf16.msra.mxu0 %v897
    %910 = vmatpush.bf16.msra.mxu0 %v896
    %911 = vmatpush.bf16.msra.mxu0 %v895
    %912 = vmatpush.bf16.msra.mxu0 %v894
    %913 = vmatmul.bf16.gmra.mxu0 %v903
    %v914 = vpop.f32.mrf.mxu0
    %v915 = vadd.f32 %v877, %v914
    %v916 = vpop.f32.mrf.mxu0
    %v917 = vadd.f32 %v877, %v916
    %918 = vdwg.mxu0
    %v919 = vadd.f32 %v841, %v915
    %v920 = vadd.f32 %v842, %v917
    %v921 = vsel %vm144, %v919, 0.0
    %922 = vadd.xlane.f32.xlu0 %v921
    %v923 = vpop.xlane.xlu0 %922
    %v924 = vsel %vm144, %v920, 0.0
    %925 = vadd.xlane.f32.xlu0 %v924
    %v926 = vpop.xlane.xlu0 %925
    %v927 = vmul.f32 %v923, %v398
    %v928 = vmul.f32 %v926, %v398
    %v929 = vsub.f32 %v919, %v927
    %v930 = vsub.f32 %v920, %v928
    %v931 = vmul.f32 %v929, %v929
    %v932 = vmul.f32 %v930, %v930
    %v933 = vsel %vm144, %v931, 0.0
    %934 = vadd.xlane.f32.xlu0 %v933
    %v935 = vpop.xlane.xlu0 %934
    %v936 = vsel %vm144, %v932, 0.0
    %937 = vadd.xlane.f32.xlu0 %v936
    %v938 = vpop.xlane.xlu0 %937
    %v939 = vmul.f32 %v935, %v398
    %v940 = vmul.f32 %v938, %v398
    %v941 = vadd.f32 %v939, 1e-05
    %v942 = vadd.f32 %v940, 1e-05
    %v943 = vrsqrt.pop %v941
    %v944 = vmul.f32 %v943, %v941
    %v945 = vmul.f32 %v944, %v943
    %v946 = vmul.f32 0.5, %v945
    %v947 = vsub.f32 1.5, %v946
    %v948 = vmul.f32 %v943, %v947
    %vm949 = vweird.f32 %v941
    %vm950 = vweird.f32 %v943
    %vm951 = vmor %vm949, %vm950
    %v952 = vsel %vm951, %v943, %v948
    %v953 = vrsqrt.pop %v942
    %v954 = vmul.f32 %v953, %v942
    %v955 = vmul.f32 %v954, %v953
    %v956 = vmul.f32 0.5, %v955
    %v957 = vsub.f32 1.5, %v956
    %v958 = vmul.f32 %v953, %v957
    %vm959 = vweird.f32 %v942
    %vm960 = vweird.f32 %v953
    %vm961 = vmor %vm959, %vm960
    %v962 = vsel %vm961, %v953, %v958
    %v963 = vmul.f32 %v929, %v952
    %v964 = vmul.f32 %v930, %v962
    %v965 = vperm.slane %v594, 6
    %v966 = vmul.f32 %v963, %v965
    %v967 = vmul.f32 %v964, %v965
    %v968 = vperm.slane %v594, 7
    %v969 = vadd.f32 %v966, %v968
    %v970 = vadd.f32 %v967, %v968
    %v971 = vpack.c.bf16 %v970, %v969
    %v972 = vld [vmem:[#allocation10] sm:$0xf]
    %v973 = vld [vmem:[#allocation10 + $0x4] sm:$0xf]
    %v974 = vld [vmem:[#allocation10 + $0x8] sm:$0xf]
    %v975 = vld [vmem:[#allocation10 + $0xc] sm:$0xf]
    %v976 = vld [vmem:[%s7] sm:$0x1]
    %v978 = vperm.slane %v976, 0
    %v984 = vunpack.c.l.b16 %v972
    %v985 = vunpack.c.l.b16 %v973
    %v986 = vunpack.c.l.b16 %v974
    %v987 = vunpack.c.l.b16 %v975
    %v988 = vpack.c.b16 %v985, %v984
    %v989 = vpack.c.b16 %v987, %v986
    %v993 = vsel %vm144, %v971, 0
    %995 = vmatpush.bf16.msra.mxu0 0
    %996 = vmatpush.bf16.msra.mxu0 0
    %997 = vmatpush.bf16.msra.mxu0 0
    %998 = vmatpush.bf16.msra.mxu0 0
    %999 = vmatpush.bf16.msra.mxu0 0
    %1000 = vmatpush.bf16.msra.mxu0 0
    %1001 = vmatpush.bf16.msra.mxu0 %v989
    %1002 = vmatpush.bf16.msra.mxu0 %v988
    %1003 = vmatmul.bf16.gmra.mxu0 %v993
    %v1004 = vpop.f32.mrf.mxu0
    %v1005 = vadd.f32 %v978, %v1004
    %v1006 = vpop.f32.mrf.mxu0
    %v1007 = vadd.f32 %v978, %v1006
    %1008 = vdwg.mxu0
    %1009 = vst [vmem:[#allocation11] sm:$0xff] %v1005
    %1010 = vst [vmem:[#allocation11 + $0x8] sm:$0xff] %v1007
    // Predicated region
    $region54: #{tpu_custom_call.1} parent=1 // pred_check
      _
    $region55: #{tpu_custom_call.1} parent=1 // pred_check_branch
      %1012 = sbr.rel (0) target = $region57
    $region56: #{tpu_custom_call.1} parent=1 // pred_region
      %1014 = vsyncadd [#allocation4], 0
      %s1015 = sshll.u32 [#allocation11], 4
      %s1016 = int_to_ptr.vmem [resolvable:$true] %s1015
      %s1017 = sshll.u32 %s8, 4
      %s1018 = int_to_ptr.hbm [resolvable:$true] %s1017
      %1023 = dma.vmem_to_hbm [thread:$0]  %s1016, 256, %s1018, [#allocation4], 128, 128, 8
    $region57: #{tpu_custom_call.1} parent=1 // pred_fallthru
      _
    // Predicated region
    $region58: #{tpu_custom_call.1} parent=1 // pred_check
      _
    $region59: #{tpu_custom_call.1} parent=1 // pred_check_branch
      %1025 = sbr.rel (0) target = $region61
    $region60: #{tpu_custom_call.1} parent=1 // pred_region
      %1027 = dma.done [#allocation4], 256
    $region61: #{tpu_custom_call.1} parent=1 // pred_fallthru
      _
    %1028 = vsyncpa [#allocation3], 1
    %1029 = vsyncpa [#allocation6], 1
    %1030 = vsyncpa [#allocation9], 1
    %1031 = vsyncpa [#allocation4], 1

</llo_original>
